<compile_context>
chip_gen: v7x
topology: tpu7x:2x2x1
jax: 0.10.0
libtpu: 0.0.40
codegen_flags: <defaults>
</compile_context>

<pallas_src>
import math
import functools

import jax
import jax.numpy as jnp
from jax.experimental import pallas as pl
from jax.experimental.pallas import tpu as pltpu


def _bert_self_attention_kernel(x_ref, wqkv_ref, bqkv_ref, mask_ref, o_ref,
                                *, num_heads, head_dim):
    # x_ref:    (1, S, E)
    # wqkv_ref: (E, 3*H*Dh)   -> [Wq * scale | Wk | Wv]
    # bqkv_ref: (1, 3*H*Dh)   -> [bq * scale | bk | bv]   (f32)
    # mask_ref: (1, 1, 1, S)  -> additive BERT mask
    # o_ref:    (1, S, H*Dh)  -> lane-dense output
    S = x_ref.shape[1]
    HD = num_heads * head_dim
    x = x_ref[0]                                            # (S, E), input dtype

    # Fused QKV projection on the MXU with f32 accumulation.
    qkv = jnp.dot(x, wqkv_ref[...], preferred_element_type=jnp.float32)
    qkv = (qkv + bqkv_ref[...]).astype(x.dtype)             # (S, 3*H*Dh)

    # Split into per-head (H, S, Dh) operands (in-VMEM relayout only).
    def heads(lo):
        blk = qkv[:, lo:lo + HD]                            # (S, H*Dh)
        return blk.reshape(S, num_heads, head_dim).transpose(1, 0, 2)

    q = heads(0)            # already scaled by 1/sqrt(Dh) via the folded weights
    k = heads(HD)
    v = heads(2 * HD)

    # Batched per-head scores; contraction over Dh, no explicit transpose of k.
    scores = jnp.einsum("hqd,hkd->hqk", q, k,
                        preferred_element_type=jnp.float32)  # (H, S, S) f32
    scores = scores + mask_ref[0, 0]                         # (1, S) broadcast

    # Numerically stable softmax over keys (f32 math).
    scores = scores - jnp.max(scores, axis=-1, keepdims=True)
    probs = jnp.exp(scores)
    probs = probs * pl.reciprocal(jnp.sum(probs, axis=-1, keepdims=True),
                                  approx=True)

    # TODO(synk): attention_probs dropout is identity here (eval / p=0
    # semantics); training dropout needs pltpu.prng_seed + stateful_bernoulli.

    ctx = jnp.einsum("hqk,hkd->hqd", probs.astype(x.dtype), v,
                     preferred_element_type=jnp.float32)     # (H, S, Dh)

    # (H, S, Dh) -> (S, H*Dh): lane-dense store, matches torch permute+view.
    o_ref[0] = ctx.transpose(1, 0, 2).reshape(S, HD).astype(o_ref.dtype)


def bert_self_attention(hidden_states, attention_mask, params,
                        num_attention_heads):
    """hidden_states: [B, S, E]; attention_mask: [B, 1, 1, S] (additive)."""
    B, S, E = hidden_states.shape
    wq, bq = params["query"]   # wq: [E, H*Dh], bq: [H*Dh]
    wk, bk = params["key"]
    wv, bv = params["value"]
    all_head_size = wq.shape[1]
    H = num_attention_heads
    Dh = all_head_size // H
    scale = 1.0 / math.sqrt(Dh)

    dtype = hidden_states.dtype
    # Fuse [Wq|Wk|Wv] and fold the 1/sqrt(Dh) scale into the query projection.
    wqkv = jnp.concatenate([wq * scale, wk, wv], axis=1).astype(dtype)  # (E,3HD)
    bqkv = jnp.concatenate([bq * scale, bk, bv])[None, :].astype(jnp.float32)

    kernel = functools.partial(_bert_self_attention_kernel,
                               num_heads=H, head_dim=Dh)

    itemsize = jnp.dtype(dtype).itemsize
    cost = pl.CostEstimate(
        flops=2 * B * S * E * 3 * all_head_size + 4 * B * H * S * S * Dh,
        transcendentals=B * H * S * S,
        bytes_accessed=(B * S * E + E * 3 * all_head_size + B * S * all_head_size)
        * itemsize + (3 * all_head_size + B * S) * 4,
    )

    x_spec = pl.BlockSpec((1, S, E), lambda b: (b, 0, 0))
    w_spec = pl.BlockSpec((E, 3 * all_head_size), lambda b: (0, 0))
    b_spec = pl.BlockSpec((1, 3 * all_head_size), lambda b: (0, 0))
    m_spec = pl.BlockSpec((1, 1, 1, S), lambda b: (b, 0, 0, 0))
    o_spec = pl.BlockSpec((1, S, all_head_size), lambda b: (b, 0, 0))

    out = pl.pallas_call(
        kernel,
        out_shape=jax.ShapeDtypeStruct((B, S, all_head_size), dtype),
        grid_spec=pltpu.PrefetchScalarGridSpec(
            num_scalar_prefetch=0,
            grid=(B,),
            in_specs=[x_spec, w_spec, b_spec, m_spec],
            out_specs=o_spec,
        ),
        compiler_params=pltpu.CompilerParams(
            dimension_semantics=("parallel",),
            vmem_limit_bytes=32 * 1024 * 1024),
        cost_estimate=cost,
    )(hidden_states, wqkv, bqkv, attention_mask)
    return out                                   # already [B, S, H*Dh]


def _reference(hidden_states, attention_mask, params, num_attention_heads):
    """Pure-JAX reference with identical semantics (sanity check)."""
    B, S, E = hidden_states.shape
    wq, bq = params["query"]
    wk, bk = params["key"]
    wv, bv = params["value"]
    H = num_attention_heads
    Dh = wq.shape[1] // H

    def split(x):
        return x.reshape(B, S, H, Dh).transpose(0, 2, 1, 3)   # [B,H,S,Dh]

    q = split(hidden_states @ wq + bq)
    k = split(hidden_states @ wk + bk)
    v = split(hidden_states @ wv + bv)
    scores = jnp.einsum("bhqd,bhkd->bhqk", q, k) / math.sqrt(Dh)
    scores = scores + attention_mask
    probs = jax.nn.softmax(scores, axis=-1)
    ctx = jnp.einsum("bhqk,bhkd->bhqd", probs, v)
    return ctx.transpose(0, 2, 1, 3).reshape(B, S, H * Dh)


if __name__ == "__main__":
    # Small config consistent with the module:
    #   emb_dim = hidden_size = 32, num_attention_heads = 4 -> head_size = 8
    B, S, E = 2, 8, 32
    H = 4
    all_head_size = 32

    key = jax.random.PRNGKey(0)
    k_x, k_m, kq_w, kq_b, kk_w, kk_b, kv_w, kv_b = jax.random.split(key, 8)

    hidden_states = jax.random.normal(k_x, (B, S, E), dtype=jnp.float32)
    # Additive BERT-style mask: 0 for visible, -10000 for masked positions.
    mask_bits = (jax.random.uniform(k_m, (B, 1, 1, S)) > 0.2).astype(jnp.float32)
    attention_mask = (1.0 - mask_bits) * -10000.0

    def linear_init(kw, kb, fan_in, fan_out):
        bound = 1.0 / math.sqrt(fan_in)
        w = jax.random.uniform(kw, (fan_in, fan_out), jnp.float32, -bound, bound)
        b = jax.random.uniform(kb, (fan_out,), jnp.float32, -bound, bound)
        return w, b

    params = {
        "query": linear_init(kq_w, kq_b, E, all_head_size),
        "key":   linear_init(kk_w, kk_b, E, all_head_size),
        "value": linear_init(kv_w, kv_b, E, all_head_size),
    }

    out = bert_self_attention(hidden_states, attention_mask, params, H)
    out = jax.block_until_ready(out)

    ref = _reference(hidden_states, attention_mask, params, H)
    assert out.shape == (B, S, all_head_size)
    # Tolerance covers the EUP approximate reciprocal used for the softmax
    # denominator (relative error <~1e-3); real bugs would be O(0.1+).
    assert jnp.allclose(out, ref, atol=5e-3, rtol=5e-3), "mismatch vs reference"

    print("KERNEL_OK")
</pallas_src>

<mosaic_0001>
module attributes {stable_mosaic.version = 11 : i64} {
  func.func @_bert_self_attention_kernel(%arg0: i32, %arg1: memref<1x8x32xf32, #tpu.memory_space<vmem>>, %arg2: memref<32x96xf32, #tpu.memory_space<vmem>>, %arg3: memref<1x96xf32, #tpu.memory_space<vmem>>, %arg4: memref<1x1x1x8xf32, #tpu.memory_space<vmem>>, %arg5: memref<1x8x32xf32, #tpu.memory_space<vmem>>) attributes {dimension_semantics = [#tpu.dimension_semantics<parallel>], iteration_bounds = array<i64: 2>, scalar_prefetch = 0 : i64, scratch_operands = 0 : i64, tpu.core_type = #tpu.core_type<tc>, window_params = [{transform_indices = @transform_0, window_bounds = array<i64: 1, 8, 32>}, {pipeline_mode = #tpu.pipeline_mode<synchronous>, transform_indices = @transform_1, window_bounds = array<i64: 32, 96>}, {pipeline_mode = #tpu.pipeline_mode<synchronous>, transform_indices = @transform_2, window_bounds = array<i64: 1, 96>}, {transform_indices = @transform_3, window_bounds = array<i64: 1, 1, 1, 8>}, {transform_indices = @transform_4, window_bounds = array<i64: 1, 8, 32>}]} {
    %c0 = arith.constant 0 : index
    %c0_0 = arith.constant 0 : index
    %c0_1 = arith.constant 0 : index
    %0 = vector.load %arg1[%c0, %c0_0, %c0_1] : memref<1x8x32xf32, #tpu.memory_space<vmem>>, vector<1x8x32xf32>
    %1 = vector.shape_cast %0 : vector<1x8x32xf32> to vector<8x32xf32>
    %c0_2 = arith.constant 0 : index
    %c0_3 = arith.constant 0 : index
    %2 = vector.load %arg2[%c0_2, %c0_3] : memref<32x96xf32, #tpu.memory_space<vmem>>, vector<32x96xf32>
    %cst = arith.constant dense<0.000000e+00> : vector<8x96xf32>
    %3 = tpu.matmul %1, %2, %cst {dimension_numbers = #tpu.dot_dimension_numbers<[1], [0], [0], [1], [0, 0, 1, 1], [], []>} : vector<8x32xf32>, vector<32x96xf32>, vector<8x96xf32> -> vector<8x96xf32>
    %c0_4 = arith.constant 0 : index
    %c0_5 = arith.constant 0 : index
    %4 = vector.load %arg3[%c0_4, %c0_5] : memref<1x96xf32, #tpu.memory_space<vmem>>, vector<1x96xf32>
    %5 = vector.broadcast %4 : vector<1x96xf32> to vector<8x96xf32>
    %6 = arith.addf %3, %5 : vector<8x96xf32>
    %7 = vector.extract_strided_slice %6 {offsets = [0, 0], sizes = [8, 32], strides = [1, 1]} : vector<8x96xf32> to vector<8x32xf32>
    %8 = vector.shape_cast %7 : vector<8x32xf32> to vector<8x4x8xf32>
    %9 = tpu.transpose %8, [1, 0, 2] : vector<8x4x8xf32> -> vector<4x8x8xf32>
    %10 = vector.extract_strided_slice %6 {offsets = [0, 32], sizes = [8, 32], strides = [1, 1]} : vector<8x96xf32> to vector<8x32xf32>
    %11 = vector.shape_cast %10 : vector<8x32xf32> to vector<8x4x8xf32>
    %12 = tpu.transpose %11, [1, 0, 2] : vector<8x4x8xf32> -> vector<4x8x8xf32>
    %13 = vector.extract_strided_slice %6 {offsets = [0, 64], sizes = [8, 32], strides = [1, 1]} : vector<8x96xf32> to vector<8x32xf32>
    %14 = vector.shape_cast %13 : vector<8x32xf32> to vector<8x4x8xf32>
    %15 = tpu.transpose %14, [1, 0, 2] : vector<8x4x8xf32> -> vector<4x8x8xf32>
    "tpu.trace_start"() <{level = 10 : i32, message = "hqd,hkd->hqk"}> : () -> ()
    %cst_6 = arith.constant dense<0.000000e+00> : vector<4x8x8xf32>
    %16 = tpu.matmul %9, %12, %cst_6 {dimension_numbers = #tpu.dot_dimension_numbers<[2], [2], [1], [1], [0, 0, 0, 1, 1, 1], [0], [0]>} : vector<4x8x8xf32>, vector<4x8x8xf32>, vector<4x8x8xf32> -> vector<4x8x8xf32>
    "tpu.trace_stop"() : () -> ()
    %c0_7 = arith.constant 0 : index
    %c0_8 = arith.constant 0 : index
    %c0_9 = arith.constant 0 : index
    %c0_10 = arith.constant 0 : index
    %17 = vector.load %arg4[%c0_7, %c0_8, %c0_9, %c0_10] : memref<1x1x1x8xf32, #tpu.memory_space<vmem>>, vector<1x1x1x8xf32>
    %18 = vector.shape_cast %17 : vector<1x1x1x8xf32> to vector<1x8xf32>
    %19 = vector.shape_cast %18 : vector<1x8xf32> to vector<1x1x8xf32>
    %20 = vector.broadcast %19 : vector<1x1x8xf32> to vector<4x8x8xf32>
    %21 = arith.addf %16, %20 : vector<4x8x8xf32>
    %cst_11 = arith.constant dense<0xFF800000> : vector<4x8xf32>
    %22 = vector.multi_reduction <maximumf>, %21, %cst_11 [2] : vector<4x8x8xf32> to vector<4x8xf32>
    %23 = vector.shape_cast %22 : vector<4x8xf32> to vector<4x8x1xf32>
    %24 = vector.broadcast %23 : vector<4x8x1xf32> to vector<4x8x8xf32>
    %25 = arith.subf %21, %24 : vector<4x8x8xf32>
    %26 = math.exp %25 : vector<4x8x8xf32>
    %cst_12 = arith.constant dense<0.000000e+00> : vector<4x8xf32>
    %27 = vector.multi_reduction <add>, %26, %cst_12 [2] : vector<4x8x8xf32> to vector<4x8xf32>
    %28 = vector.shape_cast %27 : vector<4x8xf32> to vector<4x8x1xf32>
    %29 = tpu.reciprocal %28 {approx = true} : vector<4x8x1xf32> -> vector<4x8x1xf32>
    %30 = vector.broadcast %29 : vector<4x8x1xf32> to vector<4x8x8xf32>
    %31 = arith.mulf %26, %30 : vector<4x8x8xf32>
    "tpu.trace_start"() <{level = 10 : i32, message = "hqk,hkd->hqd"}> : () -> ()
    %cst_13 = arith.constant dense<0.000000e+00> : vector<4x8x8xf32>
    %32 = tpu.matmul %31, %15, %cst_13 {dimension_numbers = #tpu.dot_dimension_numbers<[2], [1], [1], [2], [0, 0, 0, 1, 1, 2], [0], [0]>} : vector<4x8x8xf32>, vector<4x8x8xf32>, vector<4x8x8xf32> -> vector<4x8x8xf32>
    "tpu.trace_stop"() : () -> ()
    %33 = tpu.transpose %32, [1, 0, 2] : vector<4x8x8xf32> -> vector<8x4x8xf32>
    %34 = vector.shape_cast %33 : vector<8x4x8xf32> to vector<8x32xf32>
    %c0_14 = arith.constant 0 : index
    %c0_15 = arith.constant 0 : index
    %c0_16 = arith.constant 0 : index
    %35 = vector.load %arg5[%c0_14, %c0_15, %c0_16] : memref<1x8x32xf32, #tpu.memory_space<vmem>>, vector<1x8x32xf32>
    %36 = vector.shape_cast %35 : vector<1x8x32xf32> to vector<8x32xf32>
    %37 = vector.shape_cast %34 : vector<8x32xf32> to vector<1x8x32xf32>
    tpu.vector_store %arg5[%c0_14, %c0_15, %c0_16], %37 {strides = array<i32>} : memref<1x8x32xf32, #tpu.memory_space<vmem>>, vector<1x8x32xf32>,
    return
  }
  func.func @transform_0(%arg0: i32) -> (i32, i32, i32) {
    %c0_i32 = arith.constant 0 : i32
    %c0_i32_0 = arith.constant 0 : i32
    %c0_i32_1 = arith.constant 0 : i32
    return %arg0, %c0_i32, %c0_i32_0 : i32, i32, i32
  }
  func.func @transform_1(%arg0: i32) -> (i32, i32) {
    %c0_i32 = arith.constant 0 : i32
    %c0_i32_0 = arith.constant 0 : i32
    %c0_i32_1 = arith.constant 0 : i32
    return %c0_i32, %c0_i32_0 : i32, i32
  }
  func.func @transform_2(%arg0: i32) -> (i32, i32) {
    %c0_i32 = arith.constant 0 : i32
    %c0_i32_0 = arith.constant 0 : i32
    %c0_i32_1 = arith.constant 0 : i32
    return %c0_i32, %c0_i32_0 : i32, i32
  }
  func.func @transform_3(%arg0: i32) -> (i32, i32, i32, i32) {
    %c0_i32 = arith.constant 0 : i32
    %c0_i32_0 = arith.constant 0 : i32
    %c0_i32_1 = arith.constant 0 : i32
    %c0_i32_2 = arith.constant 0 : i32
    return %arg0, %c0_i32, %c0_i32_0, %c0_i32_1 : i32, i32, i32, i32
  }
  func.func @transform_4(%arg0: i32) -> (i32, i32, i32) {
    %c0_i32 = arith.constant 0 : i32
    %c0_i32_0 = arith.constant 0 : i32
    %c0_i32_1 = arith.constant 0 : i32
    return %arg0, %c0_i32, %c0_i32_0 : i32, i32, i32
  }
}

</mosaic_0001>

<llo_original>
// kernel: tpu_custom_call.1
$region0: #{tpu_custom_call.1}
  #allocation0 [shape = 'u32[]', space=smem, size = 0x4, offset = 0x4, fixed_abs, tag = 'smem constant byte address 0x4 - core index']
  #allocation1 [shape = 'u32[144,128]{1,0:T(1,128)}', space=vmem, size = 0x12000, scoped, tag = 'internal scratch']
  %s0 = inlined_call_operand.hbm [shape: f32[2,8,32], index: 0, kind: input, shape index: {}]
  %s1 = inlined_call_operand.hbm [shape: f32[32,96], index: 1, kind: input, shape index: {}]
  %s2 = inlined_call_operand.vmem [shape: f32[1,96], index: 2, kind: input, shape index: {}]
  %s3 = inlined_call_operand.vmem [shape: f32[2,1,1,8], index: 3, kind: input, shape index: {}]
  %s4 = inlined_call_operand.hbm [shape: f32[2,8,32], index: 4, kind: output, shape index: {}]
  %s5 = sld [smem:[#allocation0]]
  $region57: #{tpu_custom_call.1} parent=0
    _
  %s7 = ssub.s32 1, %s5
  %s8 = scalar_select 0, %s7, %s5
  $region1: #{tpu_custom_call.1} parent=0
    #allocation2 [shape = 'u8[8192]{0}', space=vmem, size = 0x2000, scoped, tag = 'input window, operand 0']
    #allocation3 [shape = 's32[2]{0}', space=sflag, size = 0x8, scoped, tag = 'scoped memory for tpu_custom_call.1']
    #allocation4 [shape = 's32[2]{0}', space=sflag, size = 0x8, scoped, tag = 'scoped memory for tpu_custom_call.1']
    #allocation5 [shape = 'u8[16384]{0}', space=vmem, size = 0x4000, scoped, tag = 'input window, operand 1, single buffered']
    #allocation6 [shape = 's32[1]{0}', space=sflag, size = 0x4, scoped, tag = 'scoped memory for tpu_custom_call.1']
    #allocation7 [shape = 'u8[8192]{0}', space=vmem, size = 0x2000, scoped, tag = 'output window, operand 0']
    %9 = vsyncpa [#allocation3], 0
    %s10 = scalar_lea.sflag [#allocation3], 1
    %11 = vsyncpa %s10, 0
    %12 = vsyncpa [#allocation6], 0
    %13 = vsyncpa [#allocation4], 0
    %s14 = scalar_lea.sflag [#allocation4], 1
    %15 = vsyncpa %s14, 0
    loop: start=0, step=1, limit=4
    $region2: #{tpu_custom_call.1} parent=1 // loop_pre_header
      _
    $region3: #{tpu_custom_call.1} parent=1 // loop_header
      %s17 = sphi 0, %s21
      %p18 = scmp.ge.s32.totalorder %s17, 4
      %s27 = sphi 0, %s29
      %s30 = sphi 0, %s27
      %s31 = sphi 0, %s30
      %s47 = sphi 0, %s31
      %s51 = sphi 0, %s51
      %s53 = sphi 0, %s51
      %s54 = sphi 0, %s53
      %s68 = sphi 0, %s54
      %s72 = sphi 0, %s72
      %s74 = sphi 0, %s72
      %s75 = sphi 0, %s74
      %s89 = sphi 0, %s75
      %s95 = sphi 0, %s97
      %s98 = sphi 0, %s95
      %s99 = sphi 0, %s98
      %s115 = sphi 0, %s99
      %s121 = sphi 0, %s123
      %s124 = sphi 0, %s121
      %s125 = sphi 0, %s124
      %s141 = sphi 0, %s125
    $region4: #{tpu_custom_call.1} parent=1 // loop_header_branch
      %20 = sbr.rel (%p18) target = $region8
    $region5: #{tpu_custom_call.1} parent=1 // loop_body
      %s22 = ssub.s32 %s17, 1
      %s23 = ssub.s32 %s17, 2
      %s24 = sadd.s32 %s17, 1
      %s25 = ssub.s32 %s17, %s24
      %p26 = scmp.eq.s32.totalorder %s25, 0
      %s28 = sadd.s32 %s27, 1
      %s29 = scalar_select %p26, %s27, %s28
      %p32 = pneg %p26
      %p33 = scmp.eq.s32.totalorder %s17, 1
      %p34 = por %p32, %p33
      %p35 = scmp.ne.s32.totalorder %s27, %s30
      %p36 = scmp.eq.s32.totalorder %s17, 0
      %p37 = por %p35, %p36
      %p38 = scmp.ne.s32.totalorder %s27, %s30
      %p39 = scmp.eq.s32.totalorder %s22, 1
      %p40 = por %p38, %p39
      %p41 = scmp.ne.s32.totalorder %s30, %s31
      %p42 = scmp.eq.s32.totalorder %s22, 0
      %p43 = por %p41, %p42
      %p44 = scmp.ne.s32.totalorder %s30, %s31
      %p45 = scmp.eq.s32.totalorder %s23, 1
      %p46 = por %p44, %p45
      %p48 = scmp.ne.s32.totalorder %s31, %s47
      %p49 = scmp.eq.s32.totalorder %s23, 0
      %p50 = por %p48, %p49
      %s52 = sadd.s32 %s51, 1
      %p55 = scmp.eq.s32.totalorder %s17, 1
      %p56 = scmp.ne.s32.totalorder %s51, %s53
      %p57 = scmp.eq.s32.totalorder %s17, 0
      %p58 = por %p56, %p57
      %p59 = scmp.ne.s32.totalorder %s51, %s53
      %p60 = scmp.eq.s32.totalorder %s22, 1
      %p61 = por %p59, %p60
      %p62 = scmp.ne.s32.totalorder %s53, %s54
      %p63 = scmp.eq.s32.totalorder %s22, 0
      %p64 = por %p62, %p63
      %p65 = scmp.ne.s32.totalorder %s53, %s54
      %p66 = scmp.eq.s32.totalorder %s23, 1
      %p67 = por %p65, %p66
      %p69 = scmp.ne.s32.totalorder %s54, %s68
      %p70 = scmp.eq.s32.totalorder %s23, 0
      %p71 = por %p69, %p70
      %s73 = sadd.s32 %s72, 1
      %p76 = scmp.eq.s32.totalorder %s17, 1
      %p77 = scmp.ne.s32.totalorder %s72, %s74
      %p78 = scmp.eq.s32.totalorder %s17, 0
      %p79 = por %p77, %p78
      %p80 = scmp.ne.s32.totalorder %s72, %s74
      %p81 = scmp.eq.s32.totalorder %s22, 1
      %p82 = por %p80, %p81
      %p83 = scmp.ne.s32.totalorder %s74, %s75
      %p84 = scmp.eq.s32.totalorder %s22, 0
      %p85 = por %p83, %p84
      %p86 = scmp.ne.s32.totalorder %s74, %s75
      %p87 = scmp.eq.s32.totalorder %s23, 1
      %p88 = por %p86, %p87
      %p90 = scmp.ne.s32.totalorder %s75, %s89
      %p91 = scmp.eq.s32.totalorder %s23, 0
      %p92 = por %p90, %p91
      %s93 = ssub.s32 %s17, %s24
      %p94 = scmp.eq.s32.totalorder %s93, 0
      %s96 = sadd.s32 %s95, 1
      %s97 = scalar_select %p94, %s95, %s96
      %p100 = pneg %p94
      %p101 = scmp.eq.s32.totalorder %s17, 1
      %p102 = por %p100, %p101
      %p103 = scmp.ne.s32.totalorder %s95, %s98
      %p104 = scmp.eq.s32.totalorder %s17, 0
      %p105 = por %p103, %p104
      %p106 = scmp.ne.s32.totalorder %s95, %s98
      %p107 = scmp.eq.s32.totalorder %s22, 1
      %p108 = por %p106, %p107
      %p109 = scmp.ne.s32.totalorder %s98, %s99
      %p110 = scmp.eq.s32.totalorder %s22, 0
      %p111 = por %p109, %p110
      %p112 = scmp.ne.s32.totalorder %s98, %s99
      %p113 = scmp.eq.s32.totalorder %s23, 1
      %p114 = por %p112, %p113
      %p116 = scmp.ne.s32.totalorder %s99, %s115
      %p117 = scmp.eq.s32.totalorder %s23, 0
      %p118 = por %p116, %p117
      %s119 = ssub.s32 %s17, %s24
      %p120 = scmp.eq.s32.totalorder %s119, 0
      %s122 = sadd.s32 %s121, 1
      %s123 = scalar_select %p120, %s121, %s122
      %p126 = pneg %p120
      %p127 = scmp.eq.s32.totalorder %s17, 1
      %p128 = por %p126, %p127
      %p129 = scmp.ne.s32.totalorder %s121, %s124
      %p130 = scmp.eq.s32.totalorder %s17, 0
      %p131 = por %p129, %p130
      %p132 = scmp.ne.s32.totalorder %s121, %s124
      %p133 = scmp.eq.s32.totalorder %s22, 1
      %p134 = por %p132, %p133
      %p135 = scmp.ne.s32.totalorder %s124, %s125
      %p136 = scmp.eq.s32.totalorder %s22, 0
      %p137 = por %p135, %p136
      %p138 = scmp.ne.s32.totalorder %s124, %s125
      %p139 = scmp.eq.s32.totalorder %s23, 1
      %p140 = por %p138, %p139
      %p142 = scmp.ne.s32.totalorder %s125, %s141
      %p143 = scmp.eq.s32.totalorder %s23, 0
      %p144 = por %p142, %p143
      %p145 = scmp.le.s32.totalorder 1, %s17
      %p146 = scmp.lt.s32.totalorder %s17, 3
      %p147 = pnand %p145, %p146
      %p148 = pneg %p147
      // Predicated region
      $region9: #{tpu_custom_call.1} parent=5 // pred_check
        _
      $region10: #{tpu_custom_call.1} parent=5 // pred_check_branch
        %150 = sbr.rel (%p147) target = $region12
      $region11: #{tpu_custom_call.1} parent=5 // pred_region
        %s151 = ssub.s32 %s17, 1
        // Predicated region
        $region13: #{tpu_custom_call.1} parent=11 // pred_check
          %p152 = pneg %p64
        $region14: #{tpu_custom_call.1} parent=11 // pred_check_branch
          %154 = sbr.rel (%p152) target = $region16
        $region15: #{tpu_custom_call.1} parent=11 // pred_region
          %s156 = ssub.s32 512, 512
          %157 = vsyncadd [#allocation6], %s156
          %s158 = sshll.u32 [#allocation5], 4
          %s159 = int_to_ptr.vmem [resolvable:$true] %s158
          %164 = dma.hbm_to_vmem [thread:$0]  %s1, 512, %s159, [#allocation6], 128, 128, 8
        $region16: #{tpu_custom_call.1} parent=11 // pred_fallthru
          _
        // Predicated region
        $region17: #{tpu_custom_call.1} parent=11 // pred_check
          %p165 = pneg %p85
        $region18: #{tpu_custom_call.1} parent=11 // pred_check_branch
          %167 = sbr.rel (%p165) target = $region20
        $region19: #{tpu_custom_call.1} parent=11 // pred_region
          _
        $region20: #{tpu_custom_call.1} parent=11 // pred_fallthru
          _
      $region12: #{tpu_custom_call.1} parent=5 // pred_fallthru
        _
      %p168 = scmp.lt.s32.totalorder %s17, 2
      // Predicated region
      $region21: #{tpu_custom_call.1} parent=5 // pred_check
        %p169 = pneg %p168
      $region22: #{tpu_custom_call.1} parent=5 // pred_check_branch
        %171 = sbr.rel (%p169) target = $region24
      $region23: #{tpu_custom_call.1} parent=5 // pred_region
        // Predicated region
        $region25: #{tpu_custom_call.1} parent=23 // pred_check
          %p172 = pneg %p37
        $region26: #{tpu_custom_call.1} parent=23 // pred_check_branch
          %174 = sbr.rel (%p172) target = $region28
        $region27: #{tpu_custom_call.1} parent=23 // pred_region
          %s175 = sand.u32 %s27, 1
          %s176 = scalar_lea.sflag [#allocation3], %s175
          %s177 = sand.u32 %s27, 1
          %s178 = smul.addr %s177, 8
          %s179 = scalar_lea.vmem [#allocation2], %s178
          %s181 = ssub.s32 128, 128
          %182 = vsyncadd %s176, %s181
          %s183 = smul.addr %s17, 128
          %s184 = scalar_lea.hbm %s0, %s183
          %s186 = sshll.u32 %s179, 4
          %s187 = int_to_ptr.vmem [resolvable:$true] %s186
          %189 = dma.hbm_to_vmem [thread:$0]  %s184, 128, %s187, %s176
        $region28: #{tpu_custom_call.1} parent=23 // pred_fallthru
          _
        // Predicated region
        $region29: #{tpu_custom_call.1} parent=23 // pred_check
          %p190 = pneg %p105
        $region30: #{tpu_custom_call.1} parent=23 // pred_check_branch
          %192 = sbr.rel (%p190) target = $region32
        $region31: #{tpu_custom_call.1} parent=23 // pred_region
          %p193 = scmp.lt.s32.totalorder %s17, 1
          %s194 = scalar_select %p193, %s17, 1
          %s195 = scalar_lea.vmem %s3, %s194
        $region32: #{tpu_custom_call.1} parent=23 // pred_fallthru
          _
      $region24: #{tpu_custom_call.1} parent=5 // pred_fallthru
        _
      %p196 = scmp.le.s32.totalorder 1, %s17
      %p197 = scmp.lt.s32.totalorder %s17, 3
      %p198 = pnand %p196, %p197
      %p199 = pneg %p198
      // Predicated region
      $region33: #{tpu_custom_call.1} parent=5 // pred_check
        _
      $region34: #{tpu_custom_call.1} parent=5 // pred_check_branch
        %201 = sbr.rel (%p198) target = $region36
      $region35: #{tpu_custom_call.1} parent=5 // pred_region
        %s202 = ssub.s32 %s17, 1
        %s203 = sand.u32 %s30, 1
        %s204 = scalar_lea.sflag [#allocation3], %s203
        %s205 = sand.u32 %s30, 1
        %s206 = smul.addr %s205, 8
        %s207 = scalar_lea.vmem [#allocation2], %s206
        // Predicated region
        $region37: #{tpu_custom_call.1} parent=35 // pred_check
          %p208 = pneg %p43
        $region38: #{tpu_custom_call.1} parent=35 // pred_check_branch
          %210 = sbr.rel (%p208) target = $region40
        $region39: #{tpu_custom_call.1} parent=35 // pred_region
          %211 = dma.done %s204, 128
        $region40: #{tpu_custom_call.1} parent=35 // pred_fallthru
          _
        // Predicated region
        $region41: #{tpu_custom_call.1} parent=35 // pred_check
          %p212 = pneg %p64
        $region42: #{tpu_custom_call.1} parent=35 // pred_check_branch
          %214 = sbr.rel (%p212) target = $region44
        $region43: #{tpu_custom_call.1} parent=35 // pred_region
          %215 = dma.done [#allocation6], 512
        $region44: #{tpu_custom_call.1} parent=35 // pred_fallthru
          _
        %s216 = sand.u32 %s30, 1
        %s217 = scalar_lea.sflag [#allocation3], %s216
        %s218 = sand.u32 %s30, 1
        %s219 = smul.addr %s218, 8
        %s220 = scalar_lea.vmem [#allocation2], %s219
        %p221 = pneg %p43
        %p222 = pneg %p40
        %p223 = pneg %p64
        %p224 = pneg %p61
        %p225 = pneg %p85
        %p226 = pneg %p82
        %p227 = scmp.lt.s32.totalorder %s22, 1
        %s228 = scalar_select %p227, %s22, 1
        %s229 = scalar_lea.vmem %s3, %s228
        %p230 = pneg %p111
        %p231 = pneg %p108
        %p232 = pneg %p137
        %p233 = pneg %p134
        %s234 = sand.u32 %s124, 1
        %s235 = scalar_lea.sflag [#allocation4], %s234
        %s236 = sand.u32 %s124, 1
        %s237 = smul.addr %s236, 8
        %s238 = scalar_lea.vmem [#allocation7], %s237
        %p239 = scmp.lt.s32.totalorder %s22, 1
        %s240 = scalar_select %p239, %s22, 1
        %s241 = scalar_lea.vmem %s3, %s240
        %v242 = vld [vmem:[%s207] sm:$0xff]
        %v243 = vld [vmem:[#allocation5] sm:$0xff]
        %v244 = vld [vmem:[#allocation5 + $0x8] sm:$0xff]
        %v245 = vld [vmem:[#allocation5 + $0x10] sm:$0xff]
        %v246 = vld [vmem:[#allocation5 + $0x18] sm:$0xff]
        %v247 = vld [vmem:[%s2] sm:$0x1]
        %v249 = vlaneseq
        %v250 = vshrl.u32 %v249, 7
        %v251 = vsub.s32 0, %v250
        %v252 = vrot.slane %v247, %v251
        %vm254 = vcmask 261120
        %v256 = vsel %vm254, %v242, 0
        %258 = vmatprep.subr.mxu0 0.0
        %259 = vmatpush1.msra.mxu0 %v243
        %260 = vmatprep.subr.mxu0 0.0
        %261 = vmatpush1.msra.mxu0 %v244
        %262 = vmatprep.subr.mxu0 0.0
        %263 = vmatpush1.msra.mxu0 %v245
        %264 = vmatprep.subr.mxu0 0.0
        %265 = vmatpush1.msra.mxu0 %v246
        %266 = vmatprep.subr.mxu0 0.0
        %267 = vmatpush1.msra.mxu0 0.0
        %268 = vmatprep.subr.mxu0 0.0
        %269 = vmatpush1.msra.mxu0 0.0
        %270 = vmatprep.subr.mxu0 0.0
        %271 = vmatpush1.msra.mxu0 0.0
        %272 = vmatprep.subr.mxu0 0.0
        %273 = vmatpush1.msra.mxu0 0.0
        %274 = vmatprep.subr.mxu0 0.0
        %275 = vmatpush1.msra.mxu0 0.0
        %276 = vmatprep.subr.mxu0 0.0
        %277 = vmatpush1.msra.mxu0 0.0
        %278 = vmatprep.subr.mxu0 0.0
        %279 = vmatpush1.msra.mxu0 0.0
        %280 = vmatprep.subr.mxu0 0.0
        %281 = vmatpush1.msra.mxu0 0.0
        %282 = vmatprep.subr.mxu0 0.0
        %283 = vmatpush1.msra.mxu0 0.0
        %284 = vmatprep.subr.mxu0 0.0
        %285 = vmatpush1.msra.mxu0 0.0
        %286 = vmatprep.subr.mxu0 0.0
        %287 = vmatpush1.msra.mxu0 0.0
        %288 = vmatprep.subr.mxu0 0.0
        %289 = vmatpush1.msra.mxu0 0.0
        %290 = vmatprep.subr.mxu0 0.0
        %291 = vmatpush1.msra.mxu0 0.0
        %292 = vmatprep.subr.mxu0 0.0
        %293 = vmatpush1.msra.mxu0 0.0
        %294 = vmatprep.subr.mxu0 0.0
        %295 = vmatpush1.msra.mxu0 0.0
        %296 = vmatprep.subr.mxu0 0.0
        %297 = vmatpush1.msra.mxu0 0.0
        %298 = vmatprep.subr.mxu0 0.0
        %299 = vmatpush1.msra.mxu0 0.0
        %300 = vmatprep.subr.mxu0 0.0
        %301 = vmatpush1.msra.mxu0 0.0
        %302 = vmatprep.subr.mxu0 0.0
        %303 = vmatpush1.msra.mxu0 0.0
        %304 = vmatprep.subr.mxu0 0.0
        %305 = vmatpush1.msra.mxu0 0.0
        %306 = vmatprep.subr.mxu0 0.0
        %307 = vmatpush1.msra.mxu0 0.0
        %308 = vmatprep.subr.mxu0 0.0
        %309 = vmatpush1.msra.mxu0 0.0
        %310 = vmatprep.subr.mxu0 0.0
        %311 = vmatpush1.msra.mxu0 0.0
        %312 = vmatprep.subr.mxu0 0.0
        %313 = vmatpush1.msra.mxu0 0.0
        %314 = vmatprep.subr.mxu0 0.0
        %315 = vmatpush1.msra.mxu0 0.0
        %316 = vmatprep.subr.mxu0 0.0
        %317 = vmatpush1.msra.mxu0 0.0
        %318 = vmatprep.subr.mxu0 0.0
        %319 = vmatpush1.msra.mxu0 0.0
        %320 = vmatprep.subr.mxu0 0.0
        %321 = vmatpush1.msra.mxu0 0.0
        %322 = vmatprep.mubr.f32.mxu0 0.0
        %323 = vmatmul.mubr.f32.gmra.mrb[0].mxu0 %v256
        %v324 = vpop.f32.mrb[0].mxu0
        %v325 = vadd.f32 %v252, %v324
        %v326 = vpop.f32.mrb[0].mxu0
        %327 = vdwg.mxu0
        %329 = vrot.lane.b32.xlu0 %v325, 120
        %v330 = vpop.permute.xlu0 %329
        %332 = vrot.lane.b32.xlu0 %v325, 112
        %v333 = vpop.permute.xlu0 %332
        %335 = vrot.lane.b32.xlu0 %v325, 104
        %v336 = vpop.permute.xlu0 %335
        %v338 = vcombine.low %v325, %v333
        %v339 = vcombine.high %v325, %v333
        %v341 = vunpack.c.l.s4 1983009808
        %v342 = vunpack.c.0.s8 %v341
        %v343 = vlaneseq
        %v344 = vshrl.u32 %v343, 7
        %v345 = vsub.s32 %v342, %v344
        %v346 = vrot.slane %v338, %v345
        %v348 = vunpack.c.l.s4 1983009808
        %v349 = vunpack.c.0.s8 %v348
        %v350 = vlaneseq
        %v351 = vshrl.u32 %v350, 7
        %v352 = vsub.s32 %v349, %v351
        %v353 = vrot.slane %v339, %v352
        %v354 = vcombine.low %v330, %v336
        %v355 = vcombine.high %v330, %v336
        %v357 = vunpack.c.l.s4 1983009808
        %v358 = vunpack.c.0.s8 %v357
        %v359 = vlaneseq
        %v360 = vshrl.u32 %v359, 7
        %v361 = vsub.s32 %v358, %v360
        %v362 = vrot.slane %v354, %v361
        %v364 = vunpack.c.l.s4 1983009808
        %v365 = vunpack.c.0.s8 %v364
        %v366 = vlaneseq
        %v367 = vshrl.u32 %v366, 7
        %v368 = vsub.s32 %v365, %v367
        %v369 = vrot.slane %v355, %v368
        %v370 = vcombine.low %v346, %v362
        %v371 = vcombine.high %v346, %v362
        %v373 = vunpack.c.l.s4 1934713408
        %v374 = vunpack.c.0.s8 %v373
        %v375 = vlaneseq
        %v376 = vshrl.u32 %v375, 7
        %v377 = vsub.s32 %v374, %v376
        %v378 = vrot.slane %v370, %v377
        %v380 = vunpack.c.l.s4 1934713408
        %v381 = vunpack.c.0.s8 %v380
        %v382 = vlaneseq
        %v383 = vshrl.u32 %v382, 7
        %v384 = vsub.s32 %v381, %v383
        %v385 = vrot.slane %v371, %v384
        %v386 = vcombine.low %v353, %v369
        %v387 = vcombine.high %v353, %v369
        %v389 = vunpack.c.l.s4 1934713408
        %v390 = vunpack.c.0.s8 %v389
        %v391 = vlaneseq
        %v392 = vshrl.u32 %v391, 7
        %v393 = vsub.s32 %v390, %v392
        %v394 = vrot.slane %v386, %v393
        %v396 = vunpack.c.l.s4 1934713408
        %v397 = vunpack.c.0.s8 %v396
        %v398 = vlaneseq
        %v399 = vshrl.u32 %v398, 7
        %v400 = vsub.s32 %v397, %v399
        %v401 = vrot.slane %v387, %v400
        %v402 = vcombine.high %v378, 0.0
        %v403 = vcombine.high %v385, 0.0
        %v404 = vcombine.high %v394, 0.0
        %v405 = vcombine.high %v401, 0.0
        %v406 = vcombine.low %v378, %v385
        %v408 = vunpack.c.l.s4 1983009808
        %v409 = vunpack.c.0.s8 %v408
        %v410 = vlaneseq
        %v411 = vshrl.u32 %v410, 7
        %v412 = vsub.s32 %v409, %v411
        %v413 = vrot.slane %v406, %v412
        %v414 = vcombine.low %v402, %v403
        %v416 = vunpack.c.l.s4 1983009808
        %v417 = vunpack.c.0.s8 %v416
        %v418 = vlaneseq
        %v419 = vshrl.u32 %v418, 7
        %v420 = vsub.s32 %v417, %v419
        %v421 = vrot.slane %v414, %v420
        %v422 = vcombine.low %v394, %v401
        %v424 = vunpack.c.l.s4 1983009808
        %v425 = vunpack.c.0.s8 %v424
        %v426 = vlaneseq
        %v427 = vshrl.u32 %v426, 7
        %v428 = vsub.s32 %v425, %v427
        %v429 = vrot.slane %v422, %v428
        %v430 = vcombine.low %v404, %v405
        %v432 = vunpack.c.l.s4 1983009808
        %v433 = vunpack.c.0.s8 %v432
        %v434 = vlaneseq
        %v435 = vshrl.u32 %v434, 7
        %v436 = vsub.s32 %v433, %v435
        %v437 = vrot.slane %v430, %v436
        %v438 = vcombine.low %v413, %v421
        %v439 = vcombine.high %v413, %v421
        %v441 = vunpack.c.l.s4 1934713408
        %v442 = vunpack.c.0.s8 %v441
        %v443 = vlaneseq
        %v444 = vshrl.u32 %v443, 7
        %v445 = vsub.s32 %v442, %v444
        %v446 = vrot.slane %v438, %v445
        %v448 = vunpack.c.l.s4 1934713408
        %v449 = vunpack.c.0.s8 %v448
        %v450 = vlaneseq
        %v451 = vshrl.u32 %v450, 7
        %v452 = vsub.s32 %v449, %v451
        %v453 = vrot.slane %v439, %v452
        %v454 = vcombine.low %v429, %v437
        %v455 = vcombine.high %v429, %v437
        %v457 = vunpack.c.l.s4 1934713408
        %v458 = vunpack.c.0.s8 %v457
        %v459 = vlaneseq
        %v460 = vshrl.u32 %v459, 7
        %v461 = vsub.s32 %v458, %v460
        %v462 = vrot.slane %v454, %v461
        %v464 = vunpack.c.l.s4 1934713408
        %v465 = vunpack.c.0.s8 %v464
        %v466 = vlaneseq
        %v467 = vshrl.u32 %v466, 7
        %v468 = vsub.s32 %v465, %v467
        %v469 = vrot.slane %v455, %v468
        %v470 = vcombine.low %v446, %v462
        %v471 = vcombine.high %v446, %v462
        %v472 = vcombine.low %v453, %v469
        %v473 = vcombine.high %v453, %v469
        %474 = vrot.lane.b32.xlu0 %v325, 96
        %v475 = vpop.permute.xlu0 %474
        %476 = vrot.lane.b32.xlu0 %v330, 96
        %v477 = vpop.permute.xlu0 %476
        %478 = vrot.lane.b32.xlu0 %v333, 96
        %v479 = vpop.permute.xlu0 %478
        %480 = vrot.lane.b32.xlu0 %v336, 96
        %v481 = vpop.permute.xlu0 %480
        %v486 = vcombine.low %v475, %v479
        %v487 = vcombine.high %v475, %v479
        %v489 = vunpack.c.l.s4 1983009808
        %v490 = vunpack.c.0.s8 %v489
        %v491 = vlaneseq
        %v492 = vshrl.u32 %v491, 7
        %v493 = vsub.s32 %v490, %v492
        %v494 = vrot.slane %v486, %v493
        %v496 = vunpack.c.l.s4 1983009808
        %v497 = vunpack.c.0.s8 %v496
        %v498 = vlaneseq
        %v499 = vshrl.u32 %v498, 7
        %v500 = vsub.s32 %v497, %v499
        %v501 = vrot.slane %v487, %v500
        %v502 = vcombine.low %v477, %v481
        %v503 = vcombine.high %v477, %v481
        %v505 = vunpack.c.l.s4 1983009808
        %v506 = vunpack.c.0.s8 %v505
        %v507 = vlaneseq
        %v508 = vshrl.u32 %v507, 7
        %v509 = vsub.s32 %v506, %v508
        %v510 = vrot.slane %v502, %v509
        %v512 = vunpack.c.l.s4 1983009808
        %v513 = vunpack.c.0.s8 %v512
        %v514 = vlaneseq
        %v515 = vshrl.u32 %v514, 7
        %v516 = vsub.s32 %v513, %v515
        %v517 = vrot.slane %v503, %v516
        %v518 = vcombine.low %v494, %v510
        %v519 = vcombine.high %v494, %v510
        %v521 = vunpack.c.l.s4 1934713408
        %v522 = vunpack.c.0.s8 %v521
        %v523 = vlaneseq
        %v524 = vshrl.u32 %v523, 7
        %v525 = vsub.s32 %v522, %v524
        %v526 = vrot.slane %v518, %v525
        %v528 = vunpack.c.l.s4 1934713408
        %v529 = vunpack.c.0.s8 %v528
        %v530 = vlaneseq
        %v531 = vshrl.u32 %v530, 7
        %v532 = vsub.s32 %v529, %v531
        %v533 = vrot.slane %v519, %v532
        %v534 = vcombine.low %v501, %v517
        %v535 = vcombine.high %v501, %v517
        %v537 = vunpack.c.l.s4 1934713408
        %v538 = vunpack.c.0.s8 %v537
        %v539 = vlaneseq
        %v540 = vshrl.u32 %v539, 7
        %v541 = vsub.s32 %v538, %v540
        %v542 = vrot.slane %v534, %v541
        %v544 = vunpack.c.l.s4 1934713408
        %v545 = vunpack.c.0.s8 %v544
        %v546 = vlaneseq
        %v547 = vshrl.u32 %v546, 7
        %v548 = vsub.s32 %v545, %v547
        %v549 = vrot.slane %v535, %v548
        %v550 = vcombine.high %v526, 0.0
        %v551 = vcombine.high %v533, 0.0
        %v552 = vcombine.high %v542, 0.0
        %v553 = vcombine.high %v549, 0.0
        %v554 = vcombine.low %v526, %v533
        %v556 = vunpack.c.l.s4 1983009808
        %v557 = vunpack.c.0.s8 %v556
        %v558 = vlaneseq
        %v559 = vshrl.u32 %v558, 7
        %v560 = vsub.s32 %v557, %v559
        %v561 = vrot.slane %v554, %v560
        %v562 = vcombine.low %v550, %v551
        %v564 = vunpack.c.l.s4 1983009808
        %v565 = vunpack.c.0.s8 %v564
        %v566 = vlaneseq
        %v567 = vshrl.u32 %v566, 7
        %v568 = vsub.s32 %v565, %v567
        %v569 = vrot.slane %v562, %v568
        %v570 = vcombine.low %v542, %v549
        %v572 = vunpack.c.l.s4 1983009808
        %v573 = vunpack.c.0.s8 %v572
        %v574 = vlaneseq
        %v575 = vshrl.u32 %v574, 7
        %v576 = vsub.s32 %v573, %v575
        %v577 = vrot.slane %v570, %v576
        %v578 = vcombine.low %v552, %v553
        %v580 = vunpack.c.l.s4 1983009808
        %v581 = vunpack.c.0.s8 %v580
        %v582 = vlaneseq
        %v583 = vshrl.u32 %v582, 7
        %v584 = vsub.s32 %v581, %v583
        %v585 = vrot.slane %v578, %v584
        %v586 = vcombine.low %v561, %v569
        %v587 = vcombine.high %v561, %v569
        %v589 = vunpack.c.l.s4 1934713408
        %v590 = vunpack.c.0.s8 %v589
        %v591 = vlaneseq
        %v592 = vshrl.u32 %v591, 7
        %v593 = vsub.s32 %v590, %v592
        %v594 = vrot.slane %v586, %v593
        %v596 = vunpack.c.l.s4 1934713408
        %v597 = vunpack.c.0.s8 %v596
        %v598 = vlaneseq
        %v599 = vshrl.u32 %v598, 7
        %v600 = vsub.s32 %v597, %v599
        %v601 = vrot.slane %v587, %v600
        %v602 = vcombine.low %v577, %v585
        %v603 = vcombine.high %v577, %v585
        %v605 = vunpack.c.l.s4 1934713408
        %v606 = vunpack.c.0.s8 %v605
        %v607 = vlaneseq
        %v608 = vshrl.u32 %v607, 7
        %v609 = vsub.s32 %v606, %v608
        %v610 = vrot.slane %v602, %v609
        %v612 = vunpack.c.l.s4 1934713408
        %v613 = vunpack.c.0.s8 %v612
        %v614 = vlaneseq
        %v615 = vshrl.u32 %v614, 7
        %v616 = vsub.s32 %v613, %v615
        %v617 = vrot.slane %v603, %v616
        %v618 = vcombine.low %v594, %v610
        %v619 = vcombine.high %v594, %v610
        %v620 = vcombine.low %v601, %v617
        %v621 = vcombine.high %v601, %v617
        %622 = vrot.lane.b32.xlu0 %v325, 64
        %v623 = vpop.permute.xlu0 %622
        %624 = vrot.lane.b32.xlu0 %v330, 64
        %v625 = vpop.permute.xlu0 %624
        %626 = vrot.lane.b32.xlu0 %v333, 64
        %v627 = vpop.permute.xlu0 %626
        %628 = vrot.lane.b32.xlu0 %v336, 64
        %v629 = vpop.permute.xlu0 %628
        %v634 = vcombine.low %v623, %v627
        %v635 = vcombine.high %v623, %v627
        %v637 = vunpack.c.l.s4 1983009808
        %v638 = vunpack.c.0.s8 %v637
        %v639 = vlaneseq
        %v640 = vshrl.u32 %v639, 7
        %v641 = vsub.s32 %v638, %v640
        %v642 = vrot.slane %v634, %v641
        %v644 = vunpack.c.l.s4 1983009808
        %v645 = vunpack.c.0.s8 %v644
        %v646 = vlaneseq
        %v647 = vshrl.u32 %v646, 7
        %v648 = vsub.s32 %v645, %v647
        %v649 = vrot.slane %v635, %v648
        %v650 = vcombine.low %v625, %v629
        %v651 = vcombine.high %v625, %v629
        %v653 = vunpack.c.l.s4 1983009808
        %v654 = vunpack.c.0.s8 %v653
        %v655 = vlaneseq
        %v656 = vshrl.u32 %v655, 7
        %v657 = vsub.s32 %v654, %v656
        %v658 = vrot.slane %v650, %v657
        %v660 = vunpack.c.l.s4 1983009808
        %v661 = vunpack.c.0.s8 %v660
        %v662 = vlaneseq
        %v663 = vshrl.u32 %v662, 7
        %v664 = vsub.s32 %v661, %v663
        %v665 = vrot.slane %v651, %v664
        %v666 = vcombine.low %v642, %v658
        %v667 = vcombine.high %v642, %v658
        %v669 = vunpack.c.l.s4 1934713408
        %v670 = vunpack.c.0.s8 %v669
        %v671 = vlaneseq
        %v672 = vshrl.u32 %v671, 7
        %v673 = vsub.s32 %v670, %v672
        %v674 = vrot.slane %v666, %v673
        %v676 = vunpack.c.l.s4 1934713408
        %v677 = vunpack.c.0.s8 %v676
        %v678 = vlaneseq
        %v679 = vshrl.u32 %v678, 7
        %v680 = vsub.s32 %v677, %v679
        %v681 = vrot.slane %v667, %v680
        %v682 = vcombine.low %v649, %v665
        %v683 = vcombine.high %v649, %v665
        %v685 = vunpack.c.l.s4 1934713408
        %v686 = vunpack.c.0.s8 %v685
        %v687 = vlaneseq
        %v688 = vshrl.u32 %v687, 7
        %v689 = vsub.s32 %v686, %v688
        %v690 = vrot.slane %v682, %v689
        %v692 = vunpack.c.l.s4 1934713408
        %v693 = vunpack.c.0.s8 %v692
        %v694 = vlaneseq
        %v695 = vshrl.u32 %v694, 7
        %v696 = vsub.s32 %v693, %v695
        %v697 = vrot.slane %v683, %v696
        %v698 = vcombine.high %v674, 0.0
        %v699 = vcombine.high %v681, 0.0
        %v700 = vcombine.high %v690, 0.0
        %v701 = vcombine.high %v697, 0.0
        %v702 = vcombine.low %v674, %v681
        %v704 = vunpack.c.l.s4 1983009808
        %v705 = vunpack.c.0.s8 %v704
        %v706 = vlaneseq
        %v707 = vshrl.u32 %v706, 7
        %v708 = vsub.s32 %v705, %v707
        %v709 = vrot.slane %v702, %v708
        %v710 = vcombine.low %v698, %v699
        %v712 = vunpack.c.l.s4 1983009808
        %v713 = vunpack.c.0.s8 %v712
        %v714 = vlaneseq
        %v715 = vshrl.u32 %v714, 7
        %v716 = vsub.s32 %v713, %v715
        %v717 = vrot.slane %v710, %v716
        %v718 = vcombine.low %v690, %v697
        %v720 = vunpack.c.l.s4 1983009808
        %v721 = vunpack.c.0.s8 %v720
        %v722 = vlaneseq
        %v723 = vshrl.u32 %v722, 7
        %v724 = vsub.s32 %v721, %v723
        %v725 = vrot.slane %v718, %v724
        %v726 = vcombine.low %v700, %v701
        %v728 = vunpack.c.l.s4 1983009808
        %v729 = vunpack.c.0.s8 %v728
        %v730 = vlaneseq
        %v731 = vshrl.u32 %v730, 7
        %v732 = vsub.s32 %v729, %v731
        %v733 = vrot.slane %v726, %v732
        %v734 = vcombine.low %v709, %v717
        %v735 = vcombine.high %v709, %v717
        %v737 = vunpack.c.l.s4 1934713408
        %v738 = vunpack.c.0.s8 %v737
        %v739 = vlaneseq
        %v740 = vshrl.u32 %v739, 7
        %v741 = vsub.s32 %v738, %v740
        %v742 = vrot.slane %v734, %v741
        %v744 = vunpack.c.l.s4 1934713408
        %v745 = vunpack.c.0.s8 %v744
        %v746 = vlaneseq
        %v747 = vshrl.u32 %v746, 7
        %v748 = vsub.s32 %v745, %v747
        %v749 = vrot.slane %v735, %v748
        %v750 = vcombine.low %v725, %v733
        %v751 = vcombine.high %v725, %v733
        %v753 = vunpack.c.l.s4 1934713408
        %v754 = vunpack.c.0.s8 %v753
        %v755 = vlaneseq
        %v756 = vshrl.u32 %v755, 7
        %v757 = vsub.s32 %v754, %v756
        %v758 = vrot.slane %v750, %v757
        %v760 = vunpack.c.l.s4 1934713408
        %v761 = vunpack.c.0.s8 %v760
        %v762 = vlaneseq
        %v763 = vshrl.u32 %v762, 7
        %v764 = vsub.s32 %v761, %v763
        %v765 = vrot.slane %v751, %v764
        %v766 = vcombine.low %v742, %v758
        %v767 = vcombine.high %v742, %v758
        %v768 = vcombine.low %v749, %v765
        %v769 = vcombine.high %v749, %v765
        %v770 = vld [vmem:[%s241] sm:$0x1]
        %v772 = vlaneseq
        %v773 = vshrl.u32 %v772, 7
        %v774 = vsub.s32 0, %v773
        %v775 = vrot.slane %v770, %v774
        %vm777 = vcmask 64512
        %v779 = vsel %vm777, %v470, 0
        %v782 = vsel %vm777, %v618, 0
        %784 = vmatprep.subr.mxu0 0.0
        %785 = vmatpush1.xpose.msra.mxu0 %v782
        %786 = vmatprep.subr.mxu0 0.0
        %787 = vmatpush1.xpose.msra.mxu0 0.0
        %788 = vmatprep.subr.mxu0 0.0
        %789 = vmatpush1.xpose.msra.mxu0 0.0
        %790 = vmatprep.subr.mxu0 0.0
        %791 = vmatpush1.xpose.msra.mxu0 0.0
        %792 = vmatprep.subr.mxu0 0.0
        %793 = vmatpush1.xpose.msra.mxu0 0.0
        %794 = vmatprep.subr.mxu0 0.0
        %795 = vmatpush1.xpose.msra.mxu0 0.0
        %796 = vmatprep.subr.mxu0 0.0
        %797 = vmatpush1.xpose.msra.mxu0 0.0
        %798 = vmatprep.subr.mxu0 0.0
        %799 = vmatpush1.xpose.msra.mxu0 0.0
        %800 = vmatprep.subr.mxu0 0.0
        %801 = vmatpush1.xpose.msra.mxu0 0.0
        %802 = vmatprep.subr.mxu0 0.0
        %803 = vmatpush1.xpose.msra.mxu0 0.0
        %804 = vmatprep.subr.mxu0 0.0
        %805 = vmatpush1.xpose.msra.mxu0 0.0
        %806 = vmatprep.subr.mxu0 0.0
        %807 = vmatpush1.xpose.msra.mxu0 0.0
        %808 = vmatprep.subr.mxu0 0.0
        %809 = vmatpush1.xpose.msra.mxu0 0.0
        %810 = vmatprep.subr.mxu0 0.0
        %811 = vmatpush1.xpose.msra.mxu0 0.0
        %812 = vmatprep.subr.mxu0 0.0
        %813 = vmatpush1.xpose.msra.mxu0 0.0
        %814 = vmatprep.subr.mxu0 0.0
        %815 = vmatpush1.xpose.msra.mxu0 0.0
        %816 = vmatprep.subr.mxu0 0.0
        %817 = vmatpush1.xpose.msra.mxu0 0.0
        %818 = vmatprep.subr.mxu0 0.0
        %819 = vmatpush1.xpose.msra.mxu0 0.0
        %820 = vmatprep.subr.mxu0 0.0
        %821 = vmatpush1.xpose.msra.mxu0 0.0
        %822 = vmatprep.subr.mxu0 0.0
        %823 = vmatpush1.xpose.msra.mxu0 0.0
        %824 = vmatprep.subr.mxu0 0.0
        %825 = vmatpush1.xpose.msra.mxu0 0.0
        %826 = vmatprep.subr.mxu0 0.0
        %827 = vmatpush1.xpose.msra.mxu0 0.0
        %828 = vmatprep.subr.mxu0 0.0
        %829 = vmatpush1.xpose.msra.mxu0 0.0
        %830 = vmatprep.subr.mxu0 0.0
        %831 = vmatpush1.xpose.msra.mxu0 0.0
        %832 = vmatprep.subr.mxu0 0.0
        %833 = vmatpush1.xpose.msra.mxu0 0.0
        %834 = vmatprep.subr.mxu0 0.0
        %835 = vmatpush1.xpose.msra.mxu0 0.0
        %836 = vmatprep.subr.mxu0 0.0
        %837 = vmatpush1.xpose.msra.mxu0 0.0
        %838 = vmatprep.subr.mxu0 0.0
        %839 = vmatpush1.xpose.msra.mxu0 0.0
        %840 = vmatprep.subr.mxu0 0.0
        %841 = vmatpush1.xpose.msra.mxu0 0.0
        %842 = vmatprep.subr.mxu0 0.0
        %843 = vmatpush1.xpose.msra.mxu0 0.0
        %844 = vmatprep.subr.mxu0 0.0
        %845 = vmatpush1.xpose.msra.mxu0 0.0
        %846 = vmatprep.subr.mxu0 0.0
        %847 = vmatpush1.xpose.msra.mxu0 0.0
        %848 = vmatprep.mubr.f32.mxu0 0.0
        %849 = vmatmul.mubr.f32.gmra.mrb[0].mxu0 %v779
        %v850 = vpop.f32.mrb[0].mxu0
        %v851 = vadd.f32 %v775, %v850
        %v852 = vpop.f32.mrb[0].mxu0
        %853 = vdwg.mxu0
        %v855 = vsel %vm777, %v471, 0
        %v858 = vsel %vm777, %v619, 0
        %860 = vmatprep.subr.mxu0 0.0
        %861 = vmatpush1.xpose.msra.mxu0 %v858
        %862 = vmatprep.subr.mxu0 0.0
        %863 = vmatpush1.xpose.msra.mxu0 0.0
        %864 = vmatprep.subr.mxu0 0.0
        %865 = vmatpush1.xpose.msra.mxu0 0.0
        %866 = vmatprep.subr.mxu0 0.0
        %867 = vmatpush1.xpose.msra.mxu0 0.0
        %868 = vmatprep.subr.mxu0 0.0
        %869 = vmatpush1.xpose.msra.mxu0 0.0
        %870 = vmatprep.subr.mxu0 0.0
        %871 = vmatpush1.xpose.msra.mxu0 0.0
        %872 = vmatprep.subr.mxu0 0.0
        %873 = vmatpush1.xpose.msra.mxu0 0.0
        %874 = vmatprep.subr.mxu0 0.0
        %875 = vmatpush1.xpose.msra.mxu0 0.0
        %876 = vmatprep.subr.mxu0 0.0
        %877 = vmatpush1.xpose.msra.mxu0 0.0
        %878 = vmatprep.subr.mxu0 0.0
        %879 = vmatpush1.xpose.msra.mxu0 0.0
        %880 = vmatprep.subr.mxu0 0.0
        %881 = vmatpush1.xpose.msra.mxu0 0.0
        %882 = vmatprep.subr.mxu0 0.0
        %883 = vmatpush1.xpose.msra.mxu0 0.0
        %884 = vmatprep.subr.mxu0 0.0
        %885 = vmatpush1.xpose.msra.mxu0 0.0
        %886 = vmatprep.subr.mxu0 0.0
        %887 = vmatpush1.xpose.msra.mxu0 0.0
        %888 = vmatprep.subr.mxu0 0.0
        %889 = vmatpush1.xpose.msra.mxu0 0.0
        %890 = vmatprep.subr.mxu0 0.0
        %891 = vmatpush1.xpose.msra.mxu0 0.0
        %892 = vmatprep.subr.mxu0 0.0
        %893 = vmatpush1.xpose.msra.mxu0 0.0
        %894 = vmatprep.subr.mxu0 0.0
        %895 = vmatpush1.xpose.msra.mxu0 0.0
        %896 = vmatprep.subr.mxu0 0.0
        %897 = vmatpush1.xpose.msra.mxu0 0.0
        %898 = vmatprep.subr.mxu0 0.0
        %899 = vmatpush1.xpose.msra.mxu0 0.0
        %900 = vmatprep.subr.mxu0 0.0
        %901 = vmatpush1.xpose.msra.mxu0 0.0
        %902 = vmatprep.subr.mxu0 0.0
        %903 = vmatpush1.xpose.msra.mxu0 0.0
        %904 = vmatprep.subr.mxu0 0.0
        %905 = vmatpush1.xpose.msra.mxu0 0.0
        %906 = vmatprep.subr.mxu0 0.0
        %907 = vmatpush1.xpose.msra.mxu0 0.0
        %908 = vmatprep.subr.mxu0 0.0
        %909 = vmatpush1.xpose.msra.mxu0 0.0
        %910 = vmatprep.subr.mxu0 0.0
        %911 = vmatpush1.xpose.msra.mxu0 0.0
        %912 = vmatprep.subr.mxu0 0.0
        %913 = vmatpush1.xpose.msra.mxu0 0.0
        %914 = vmatprep.subr.mxu0 0.0
        %915 = vmatpush1.xpose.msra.mxu0 0.0
        %916 = vmatprep.subr.mxu0 0.0
        %917 = vmatpush1.xpose.msra.mxu0 0.0
        %918 = vmatprep.subr.mxu0 0.0
        %919 = vmatpush1.xpose.msra.mxu0 0.0
        %920 = vmatprep.subr.mxu0 0.0
        %921 = vmatpush1.xpose.msra.mxu0 0.0
        %922 = vmatprep.subr.mxu0 0.0
        %923 = vmatpush1.xpose.msra.mxu0 0.0
        %924 = vmatprep.mubr.f32.mxu0 0.0
        %925 = vmatmul.mubr.f32.gmra.mrb[0].mxu0 %v855
        %v926 = vpop.f32.mrb[0].mxu0
        %v927 = vadd.f32 %v775, %v926
        %v928 = vpop.f32.mrb[0].mxu0
        %929 = vdwg.mxu0
        %v931 = vsel %vm777, %v472, 0
        %v934 = vsel %vm777, %v620, 0
        %936 = vmatprep.subr.mxu0 0.0
        %937 = vmatpush1.xpose.msra.mxu0 %v934
        %938 = vmatprep.subr.mxu0 0.0
        %939 = vmatpush1.xpose.msra.mxu0 0.0
        %940 = vmatprep.subr.mxu0 0.0
        %941 = vmatpush1.xpose.msra.mxu0 0.0
        %942 = vmatprep.subr.mxu0 0.0
        %943 = vmatpush1.xpose.msra.mxu0 0.0
        %944 = vmatprep.subr.mxu0 0.0
        %945 = vmatpush1.xpose.msra.mxu0 0.0
        %946 = vmatprep.subr.mxu0 0.0
        %947 = vmatpush1.xpose.msra.mxu0 0.0
        %948 = vmatprep.subr.mxu0 0.0
        %949 = vmatpush1.xpose.msra.mxu0 0.0
        %950 = vmatprep.subr.mxu0 0.0
        %951 = vmatpush1.xpose.msra.mxu0 0.0
        %952 = vmatprep.subr.mxu0 0.0
        %953 = vmatpush1.xpose.msra.mxu0 0.0
        %954 = vmatprep.subr.mxu0 0.0
        %955 = vmatpush1.xpose.msra.mxu0 0.0
        %956 = vmatprep.subr.mxu0 0.0
        %957 = vmatpush1.xpose.msra.mxu0 0.0
        %958 = vmatprep.subr.mxu0 0.0
        %959 = vmatpush1.xpose.msra.mxu0 0.0
        %960 = vmatprep.subr.mxu0 0.0
        %961 = vmatpush1.xpose.msra.mxu0 0.0
        %962 = vmatprep.subr.mxu0 0.0
        %963 = vmatpush1.xpose.msra.mxu0 0.0
        %964 = vmatprep.subr.mxu0 0.0
        %965 = vmatpush1.xpose.msra.mxu0 0.0
        %966 = vmatprep.subr.mxu0 0.0
        %967 = vmatpush1.xpose.msra.mxu0 0.0
        %968 = vmatprep.subr.mxu0 0.0
        %969 = vmatpush1.xpose.msra.mxu0 0.0
        %970 = vmatprep.subr.mxu0 0.0
        %971 = vmatpush1.xpose.msra.mxu0 0.0
        %972 = vmatprep.subr.mxu0 0.0
        %973 = vmatpush1.xpose.msra.mxu0 0.0
        %974 = vmatprep.subr.mxu0 0.0
        %975 = vmatpush1.xpose.msra.mxu0 0.0
        %976 = vmatprep.subr.mxu0 0.0
        %977 = vmatpush1.xpose.msra.mxu0 0.0
        %978 = vmatprep.subr.mxu0 0.0
        %979 = vmatpush1.xpose.msra.mxu0 0.0
        %980 = vmatprep.subr.mxu0 0.0
        %981 = vmatpush1.xpose.msra.mxu0 0.0
        %982 = vmatprep.subr.mxu0 0.0
        %983 = vmatpush1.xpose.msra.mxu0 0.0
        %984 = vmatprep.subr.mxu0 0.0
        %985 = vmatpush1.xpose.msra.mxu0 0.0
        %986 = vmatprep.subr.mxu0 0.0
        %987 = vmatpush1.xpose.msra.mxu0 0.0
        %988 = vmatprep.subr.mxu0 0.0
        %989 = vmatpush1.xpose.msra.mxu0 0.0
        %990 = vmatprep.subr.mxu0 0.0
        %991 = vmatpush1.xpose.msra.mxu0 0.0
        %992 = vmatprep.subr.mxu0 0.0
        %993 = vmatpush1.xpose.msra.mxu0 0.0
        %994 = vmatprep.subr.mxu0 0.0
        %995 = vmatpush1.xpose.msra.mxu0 0.0
        %996 = vmatprep.subr.mxu0 0.0
        %997 = vmatpush1.xpose.msra.mxu0 0.0
        %998 = vmatprep.subr.mxu0 0.0
        %999 = vmatpush1.xpose.msra.mxu0 0.0
        %1000 = vmatprep.mubr.f32.mxu0 0.0
        %1001 = vmatmul.mubr.f32.gmra.mrb[0].mxu0 %v931
        %v1002 = vpop.f32.mrb[0].mxu0
        %v1003 = vadd.f32 %v775, %v1002
        %v1004 = vpop.f32.mrb[0].mxu0
        %1005 = vdwg.mxu0
        %v1007 = vsel %vm777, %v473, 0
        %v1010 = vsel %vm777, %v621, 0
        %1012 = vmatprep.subr.mxu0 0.0
        %1013 = vmatpush1.xpose.msra.mxu0 %v1010
        %1014 = vmatprep.subr.mxu0 0.0
        %1015 = vmatpush1.xpose.msra.mxu0 0.0
        %1016 = vmatprep.subr.mxu0 0.0
        %1017 = vmatpush1.xpose.msra.mxu0 0.0
        %1018 = vmatprep.subr.mxu0 0.0
        %1019 = vmatpush1.xpose.msra.mxu0 0.0
        %1020 = vmatprep.subr.mxu0 0.0
        %1021 = vmatpush1.xpose.msra.mxu0 0.0
        %1022 = vmatprep.subr.mxu0 0.0
        %1023 = vmatpush1.xpose.msra.mxu0 0.0
        %1024 = vmatprep.subr.mxu0 0.0
        %1025 = vmatpush1.xpose.msra.mxu0 0.0
        %1026 = vmatprep.subr.mxu0 0.0
        %1027 = vmatpush1.xpose.msra.mxu0 0.0
        %1028 = vmatprep.subr.mxu0 0.0
        %1029 = vmatpush1.xpose.msra.mxu0 0.0
        %1030 = vmatprep.subr.mxu0 0.0
        %1031 = vmatpush1.xpose.msra.mxu0 0.0
        %1032 = vmatprep.subr.mxu0 0.0
        %1033 = vmatpush1.xpose.msra.mxu0 0.0
        %1034 = vmatprep.subr.mxu0 0.0
        %1035 = vmatpush1.xpose.msra.mxu0 0.0
        %1036 = vmatprep.subr.mxu0 0.0
        %1037 = vmatpush1.xpose.msra.mxu0 0.0
        %1038 = vmatprep.subr.mxu0 0.0
        %1039 = vmatpush1.xpose.msra.mxu0 0.0
        %1040 = vmatprep.subr.mxu0 0.0
        %1041 = vmatpush1.xpose.msra.mxu0 0.0
        %1042 = vmatprep.subr.mxu0 0.0
        %1043 = vmatpush1.xpose.msra.mxu0 0.0
        %1044 = vmatprep.subr.mxu0 0.0
        %1045 = vmatpush1.xpose.msra.mxu0 0.0
        %1046 = vmatprep.subr.mxu0 0.0
        %1047 = vmatpush1.xpose.msra.mxu0 0.0
        %1048 = vmatprep.subr.mxu0 0.0
        %1049 = vmatpush1.xpose.msra.mxu0 0.0
        %1050 = vmatprep.subr.mxu0 0.0
        %1051 = vmatpush1.xpose.msra.mxu0 0.0
        %1052 = vmatprep.subr.mxu0 0.0
        %1053 = vmatpush1.xpose.msra.mxu0 0.0
        %1054 = vmatprep.subr.mxu0 0.0
        %1055 = vmatpush1.xpose.msra.mxu0 0.0
        %1056 = vmatprep.subr.mxu0 0.0
        %1057 = vmatpush1.xpose.msra.mxu0 0.0
        %1058 = vmatprep.subr.mxu0 0.0
        %1059 = vmatpush1.xpose.msra.mxu0 0.0
        %1060 = vmatprep.subr.mxu0 0.0
        %1061 = vmatpush1.xpose.msra.mxu0 0.0
        %1062 = vmatprep.subr.mxu0 0.0
        %1063 = vmatpush1.xpose.msra.mxu0 0.0
        %1064 = vmatprep.subr.mxu0 0.0
        %1065 = vmatpush1.xpose.msra.mxu0 0.0
        %1066 = vmatprep.subr.mxu0 0.0
        %1067 = vmatpush1.xpose.msra.mxu0 0.0
        %1068 = vmatprep.subr.mxu0 0.0
        %1069 = vmatpush1.xpose.msra.mxu0 0.0
        %1070 = vmatprep.subr.mxu0 0.0
        %1071 = vmatpush1.xpose.msra.mxu0 0.0
        %1072 = vmatprep.subr.mxu0 0.0
        %1073 = vmatpush1.xpose.msra.mxu0 0.0
        %1074 = vmatprep.subr.mxu0 0.0
        %1075 = vmatpush1.xpose.msra.mxu0 0.0
        %1076 = vmatprep.mubr.f32.mxu0 0.0
        %1077 = vmatmul.mubr.f32.gmra.mrb[0].mxu0 %v1007
        %v1078 = vpop.f32.mrb[0].mxu0
        %v1079 = vadd.f32 %v775, %v1078
        %v1080 = vpop.f32.mrb[0].mxu0
        %1081 = vdwg.mxu0
        %v1082 = vsel %vm777, %v851, -inf
        %1083 = vmax.xlane.f32.xlu0 %v1082
        %v1084 = vpop.xlane.xlu0 %1083
        %v1085 = vsel %vm777, %v927, -inf
        %1086 = vmax.xlane.f32.xlu0 %v1085
        %v1087 = vpop.xlane.xlu0 %1086
        %v1088 = vsel %vm777, %v1003, -inf
        %1089 = vmax.xlane.f32.xlu0 %v1088
        %v1090 = vpop.xlane.xlu0 %1089
        %v1091 = vsel %vm777, %v1079, -inf
        %1092 = vmax.xlane.f32.xlu0 %v1091
        %v1093 = vpop.xlane.xlu0 %1092
        %v1094 = vsub.f32 %v851, %v1084
        %v1095 = vsub.f32 %v927, %v1087
        %v1096 = vsub.f32 %v1003, %v1090
        %v1097 = vsub.f32 %v1079, %v1093
        %v1098 = vmul.f32 %v1094, 1.442695
        %v1099 = vpow.pop %v1098
        %v1100 = vmul.f32 %v1095, 1.442695
        %v1101 = vpow.pop %v1100
        %v1102 = vmul.f32 %v1096, 1.442695
        %v1103 = vpow.pop %v1102
        %v1104 = vmul.f32 %v1097, 1.442695
        %v1105 = vpow.pop %v1104
        %v1106 = vsel %vm777, %v1099, 0.0
        %1107 = vadd.xlane.f32.xlu0 %v1106
        %v1108 = vpop.xlane.xlu0 %1107
        %v1109 = vsel %vm777, %v1101, 0.0
        %1110 = vadd.xlane.f32.xlu0 %v1109
        %v1111 = vpop.xlane.xlu0 %1110
        %v1112 = vsel %vm777, %v1103, 0.0
        %1113 = vadd.xlane.f32.xlu0 %v1112
        %v1114 = vpop.xlane.xlu0 %1113
        %v1115 = vsel %vm777, %v1105, 0.0
        %1116 = vadd.xlane.f32.xlu0 %v1115
        %v1117 = vpop.xlane.xlu0 %1116
        %v1118 = vrcp.pop %v1108
        %v1119 = vrcp.pop %v1111
        %v1120 = vrcp.pop %v1114
        %v1121 = vrcp.pop %v1117
        %v1122 = vmul.f32 %v1099, %v1118
        %v1123 = vmul.f32 %v1101, %v1119
        %v1124 = vmul.f32 %v1103, %v1120
        %v1125 = vmul.f32 %v1105, %v1121
        %v1127 = vsel %vm777, %v1122, 0
        %1129 = vmatprep.subr.mxu0 0.0
        %1130 = vmatpush1.msra.mxu0 %v766
        %1131 = vmatprep.subr.mxu0 0.0
        %1132 = vmatpush1.msra.mxu0 0.0
        %1133 = vmatprep.subr.mxu0 0.0
        %1134 = vmatpush1.msra.mxu0 0.0
        %1135 = vmatprep.subr.mxu0 0.0
        %1136 = vmatpush1.msra.mxu0 0.0
        %1137 = vmatprep.subr.mxu0 0.0
        %1138 = vmatpush1.msra.mxu0 0.0
        %1139 = vmatprep.subr.mxu0 0.0
        %1140 = vmatpush1.msra.mxu0 0.0
        %1141 = vmatprep.subr.mxu0 0.0
        %1142 = vmatpush1.msra.mxu0 0.0
        %1143 = vmatprep.subr.mxu0 0.0
        %1144 = vmatpush1.msra.mxu0 0.0
        %1145 = vmatprep.subr.mxu0 0.0
        %1146 = vmatpush1.msra.mxu0 0.0
        %1147 = vmatprep.subr.mxu0 0.0
        %1148 = vmatpush1.msra.mxu0 0.0
        %1149 = vmatprep.subr.mxu0 0.0
        %1150 = vmatpush1.msra.mxu0 0.0
        %1151 = vmatprep.subr.mxu0 0.0
        %1152 = vmatpush1.msra.mxu0 0.0
        %1153 = vmatprep.subr.mxu0 0.0
        %1154 = vmatpush1.msra.mxu0 0.0
        %1155 = vmatprep.subr.mxu0 0.0
        %1156 = vmatpush1.msra.mxu0 0.0
        %1157 = vmatprep.subr.mxu0 0.0
        %1158 = vmatpush1.msra.mxu0 0.0
        %1159 = vmatprep.subr.mxu0 0.0
        %1160 = vmatpush1.msra.mxu0 0.0
        %1161 = vmatprep.subr.mxu0 0.0
        %1162 = vmatpush1.msra.mxu0 0.0
        %1163 = vmatprep.subr.mxu0 0.0
        %1164 = vmatpush1.msra.mxu0 0.0
        %1165 = vmatprep.subr.mxu0 0.0
        %1166 = vmatpush1.msra.mxu0 0.0
        %1167 = vmatprep.subr.mxu0 0.0
        %1168 = vmatpush1.msra.mxu0 0.0
        %1169 = vmatprep.subr.mxu0 0.0
        %1170 = vmatpush1.msra.mxu0 0.0
        %1171 = vmatprep.subr.mxu0 0.0
        %1172 = vmatpush1.msra.mxu0 0.0
        %1173 = vmatprep.subr.mxu0 0.0
        %1174 = vmatpush1.msra.mxu0 0.0
        %1175 = vmatprep.subr.mxu0 0.0
        %1176 = vmatpush1.msra.mxu0 0.0
        %1177 = vmatprep.subr.mxu0 0.0
        %1178 = vmatpush1.msra.mxu0 0.0
        %1179 = vmatprep.subr.mxu0 0.0
        %1180 = vmatpush1.msra.mxu0 0.0
        %1181 = vmatprep.subr.mxu0 0.0
        %1182 = vmatpush1.msra.mxu0 0.0
        %1183 = vmatprep.subr.mxu0 0.0
        %1184 = vmatpush1.msra.mxu0 0.0
        %1185 = vmatprep.subr.mxu0 0.0
        %1186 = vmatpush1.msra.mxu0 0.0
        %1187 = vmatprep.subr.mxu0 0.0
        %1188 = vmatpush1.msra.mxu0 0.0
        %1189 = vmatprep.subr.mxu0 0.0
        %1190 = vmatpush1.msra.mxu0 0.0
        %1191 = vmatprep.subr.mxu0 0.0
        %1192 = vmatpush1.msra.mxu0 0.0
        %1193 = vmatprep.mubr.f32.mxu0 0.0
        %1194 = vmatmul.mubr.f32.gmra.mrb[0].mxu0 %v1127
        %v1195 = vpop.f32.mrb[0].mxu0
        %v1196 = vadd.f32 0.0, %v1195
        %v1197 = vpop.f32.mrb[0].mxu0
        %1198 = vdwg.mxu0
        %v1200 = vsel %vm777, %v1123, 0
        %1202 = vmatprep.subr.mxu0 0.0
        %1203 = vmatpush1.msra.mxu0 %v767
        %1204 = vmatprep.subr.mxu0 0.0
        %1205 = vmatpush1.msra.mxu0 0.0
        %1206 = vmatprep.subr.mxu0 0.0
        %1207 = vmatpush1.msra.mxu0 0.0
        %1208 = vmatprep.subr.mxu0 0.0
        %1209 = vmatpush1.msra.mxu0 0.0
        %1210 = vmatprep.subr.mxu0 0.0
        %1211 = vmatpush1.msra.mxu0 0.0
        %1212 = vmatprep.subr.mxu0 0.0
        %1213 = vmatpush1.msra.mxu0 0.0
        %1214 = vmatprep.subr.mxu0 0.0
        %1215 = vmatpush1.msra.mxu0 0.0
        %1216 = vmatprep.subr.mxu0 0.0
        %1217 = vmatpush1.msra.mxu0 0.0
        %1218 = vmatprep.subr.mxu0 0.0
        %1219 = vmatpush1.msra.mxu0 0.0
        %1220 = vmatprep.subr.mxu0 0.0
        %1221 = vmatpush1.msra.mxu0 0.0
        %1222 = vmatprep.subr.mxu0 0.0
        %1223 = vmatpush1.msra.mxu0 0.0
        %1224 = vmatprep.subr.mxu0 0.0
        %1225 = vmatpush1.msra.mxu0 0.0
        %1226 = vmatprep.subr.mxu0 0.0
        %1227 = vmatpush1.msra.mxu0 0.0
        %1228 = vmatprep.subr.mxu0 0.0
        %1229 = vmatpush1.msra.mxu0 0.0
        %1230 = vmatprep.subr.mxu0 0.0
        %1231 = vmatpush1.msra.mxu0 0.0
        %1232 = vmatprep.subr.mxu0 0.0
        %1233 = vmatpush1.msra.mxu0 0.0
        %1234 = vmatprep.subr.mxu0 0.0
        %1235 = vmatpush1.msra.mxu0 0.0
        %1236 = vmatprep.subr.mxu0 0.0
        %1237 = vmatpush1.msra.mxu0 0.0
        %1238 = vmatprep.subr.mxu0 0.0
        %1239 = vmatpush1.msra.mxu0 0.0
        %1240 = vmatprep.subr.mxu0 0.0
        %1241 = vmatpush1.msra.mxu0 0.0
        %1242 = vmatprep.subr.mxu0 0.0
        %1243 = vmatpush1.msra.mxu0 0.0
        %1244 = vmatprep.subr.mxu0 0.0
        %1245 = vmatpush1.msra.mxu0 0.0
        %1246 = vmatprep.subr.mxu0 0.0
        %1247 = vmatpush1.msra.mxu0 0.0
        %1248 = vmatprep.subr.mxu0 0.0
        %1249 = vmatpush1.msra.mxu0 0.0
        %1250 = vmatprep.subr.mxu0 0.0
        %1251 = vmatpush1.msra.mxu0 0.0
        %1252 = vmatprep.subr.mxu0 0.0
        %1253 = vmatpush1.msra.mxu0 0.0
        %1254 = vmatprep.subr.mxu0 0.0
        %1255 = vmatpush1.msra.mxu0 0.0
        %1256 = vmatprep.subr.mxu0 0.0
        %1257 = vmatpush1.msra.mxu0 0.0
        %1258 = vmatprep.subr.mxu0 0.0
        %1259 = vmatpush1.msra.mxu0 0.0
        %1260 = vmatprep.subr.mxu0 0.0
        %1261 = vmatpush1.msra.mxu0 0.0
        %1262 = vmatprep.subr.mxu0 0.0
        %1263 = vmatpush1.msra.mxu0 0.0
        %1264 = vmatprep.subr.mxu0 0.0
        %1265 = vmatpush1.msra.mxu0 0.0
        %1266 = vmatprep.mubr.f32.mxu0 0.0
        %1267 = vmatmul.mubr.f32.gmra.mrb[0].mxu0 %v1200
        %v1268 = vpop.f32.mrb[0].mxu0
        %v1269 = vadd.f32 0.0, %v1268
        %v1270 = vpop.f32.mrb[0].mxu0
        %1271 = vdwg.mxu0
        %v1273 = vsel %vm777, %v1124, 0
        %1275 = vmatprep.subr.mxu0 0.0
        %1276 = vmatpush1.msra.mxu0 %v768
        %1277 = vmatprep.subr.mxu0 0.0
        %1278 = vmatpush1.msra.mxu0 0.0
        %1279 = vmatprep.subr.mxu0 0.0
        %1280 = vmatpush1.msra.mxu0 0.0
        %1281 = vmatprep.subr.mxu0 0.0
        %1282 = vmatpush1.msra.mxu0 0.0
        %1283 = vmatprep.subr.mxu0 0.0
        %1284 = vmatpush1.msra.mxu0 0.0
        %1285 = vmatprep.subr.mxu0 0.0
        %1286 = vmatpush1.msra.mxu0 0.0
        %1287 = vmatprep.subr.mxu0 0.0
        %1288 = vmatpush1.msra.mxu0 0.0
        %1289 = vmatprep.subr.mxu0 0.0
        %1290 = vmatpush1.msra.mxu0 0.0
        %1291 = vmatprep.subr.mxu0 0.0
        %1292 = vmatpush1.msra.mxu0 0.0
        %1293 = vmatprep.subr.mxu0 0.0
        %1294 = vmatpush1.msra.mxu0 0.0
        %1295 = vmatprep.subr.mxu0 0.0
        %1296 = vmatpush1.msra.mxu0 0.0
        %1297 = vmatprep.subr.mxu0 0.0
        %1298 = vmatpush1.msra.mxu0 0.0
        %1299 = vmatprep.subr.mxu0 0.0
        %1300 = vmatpush1.msra.mxu0 0.0
        %1301 = vmatprep.subr.mxu0 0.0
        %1302 = vmatpush1.msra.mxu0 0.0
        %1303 = vmatprep.subr.mxu0 0.0
        %1304 = vmatpush1.msra.mxu0 0.0
        %1305 = vmatprep.subr.mxu0 0.0
        %1306 = vmatpush1.msra.mxu0 0.0
        %1307 = vmatprep.subr.mxu0 0.0
        %1308 = vmatpush1.msra.mxu0 0.0
        %1309 = vmatprep.subr.mxu0 0.0
        %1310 = vmatpush1.msra.mxu0 0.0
        %1311 = vmatprep.subr.mxu0 0.0
        %1312 = vmatpush1.msra.mxu0 0.0
        %1313 = vmatprep.subr.mxu0 0.0
        %1314 = vmatpush1.msra.mxu0 0.0
        %1315 = vmatprep.subr.mxu0 0.0
        %1316 = vmatpush1.msra.mxu0 0.0
        %1317 = vmatprep.subr.mxu0 0.0
        %1318 = vmatpush1.msra.mxu0 0.0
        %1319 = vmatprep.subr.mxu0 0.0
        %1320 = vmatpush1.msra.mxu0 0.0
        %1321 = vmatprep.subr.mxu0 0.0
        %1322 = vmatpush1.msra.mxu0 0.0
        %1323 = vmatprep.subr.mxu0 0.0
        %1324 = vmatpush1.msra.mxu0 0.0
        %1325 = vmatprep.subr.mxu0 0.0
        %1326 = vmatpush1.msra.mxu0 0.0
        %1327 = vmatprep.subr.mxu0 0.0
        %1328 = vmatpush1.msra.mxu0 0.0
        %1329 = vmatprep.subr.mxu0 0.0
        %1330 = vmatpush1.msra.mxu0 0.0
        %1331 = vmatprep.subr.mxu0 0.0
        %1332 = vmatpush1.msra.mxu0 0.0
        %1333 = vmatprep.subr.mxu0 0.0
        %1334 = vmatpush1.msra.mxu0 0.0
        %1335 = vmatprep.subr.mxu0 0.0
        %1336 = vmatpush1.msra.mxu0 0.0
        %1337 = vmatprep.subr.mxu0 0.0
        %1338 = vmatpush1.msra.mxu0 0.0
        %1339 = vmatprep.mubr.f32.mxu0 0.0
        %1340 = vmatmul.mubr.f32.gmra.mrb[0].mxu0 %v1273
        %v1341 = vpop.f32.mrb[0].mxu0
        %v1342 = vadd.f32 0.0, %v1341
        %v1343 = vpop.f32.mrb[0].mxu0
        %1344 = vdwg.mxu0
        %v1346 = vsel %vm777, %v1125, 0
        %1348 = vmatprep.subr.mxu0 0.0
        %1349 = vmatpush1.msra.mxu0 %v769
        %1350 = vmatprep.subr.mxu0 0.0
        %1351 = vmatpush1.msra.mxu0 0.0
        %1352 = vmatprep.subr.mxu0 0.0
        %1353 = vmatpush1.msra.mxu0 0.0
        %1354 = vmatprep.subr.mxu0 0.0
        %1355 = vmatpush1.msra.mxu0 0.0
        %1356 = vmatprep.subr.mxu0 0.0
        %1357 = vmatpush1.msra.mxu0 0.0
        %1358 = vmatprep.subr.mxu0 0.0
        %1359 = vmatpush1.msra.mxu0 0.0
        %1360 = vmatprep.subr.mxu0 0.0
        %1361 = vmatpush1.msra.mxu0 0.0
        %1362 = vmatprep.subr.mxu0 0.0
        %1363 = vmatpush1.msra.mxu0 0.0
        %1364 = vmatprep.subr.mxu0 0.0
        %1365 = vmatpush1.msra.mxu0 0.0
        %1366 = vmatprep.subr.mxu0 0.0
        %1367 = vmatpush1.msra.mxu0 0.0
        %1368 = vmatprep.subr.mxu0 0.0
        %1369 = vmatpush1.msra.mxu0 0.0
        %1370 = vmatprep.subr.mxu0 0.0
        %1371 = vmatpush1.msra.mxu0 0.0
        %1372 = vmatprep.subr.mxu0 0.0
        %1373 = vmatpush1.msra.mxu0 0.0
        %1374 = vmatprep.subr.mxu0 0.0
        %1375 = vmatpush1.msra.mxu0 0.0
        %1376 = vmatprep.subr.mxu0 0.0
        %1377 = vmatpush1.msra.mxu0 0.0
        %1378 = vmatprep.subr.mxu0 0.0
        %1379 = vmatpush1.msra.mxu0 0.0
        %1380 = vmatprep.subr.mxu0 0.0
        %1381 = vmatpush1.msra.mxu0 0.0
        %1382 = vmatprep.subr.mxu0 0.0
        %1383 = vmatpush1.msra.mxu0 0.0
        %1384 = vmatprep.subr.mxu0 0.0
        %1385 = vmatpush1.msra.mxu0 0.0
        %1386 = vmatprep.subr.mxu0 0.0
        %1387 = vmatpush1.msra.mxu0 0.0
        %1388 = vmatprep.subr.mxu0 0.0
        %1389 = vmatpush1.msra.mxu0 0.0
        %1390 = vmatprep.subr.mxu0 0.0
        %1391 = vmatpush1.msra.mxu0 0.0
        %1392 = vmatprep.subr.mxu0 0.0
        %1393 = vmatpush1.msra.mxu0 0.0
        %1394 = vmatprep.subr.mxu0 0.0
        %1395 = vmatpush1.msra.mxu0 0.0
        %1396 = vmatprep.subr.mxu0 0.0
        %1397 = vmatpush1.msra.mxu0 0.0
        %1398 = vmatprep.subr.mxu0 0.0
        %1399 = vmatpush1.msra.mxu0 0.0
        %1400 = vmatprep.subr.mxu0 0.0
        %1401 = vmatpush1.msra.mxu0 0.0
        %1402 = vmatprep.subr.mxu0 0.0
        %1403 = vmatpush1.msra.mxu0 0.0
        %1404 = vmatprep.subr.mxu0 0.0
        %1405 = vmatpush1.msra.mxu0 0.0
        %1406 = vmatprep.subr.mxu0 0.0
        %1407 = vmatpush1.msra.mxu0 0.0
        %1408 = vmatprep.subr.mxu0 0.0
        %1409 = vmatpush1.msra.mxu0 0.0
        %1410 = vmatprep.subr.mxu0 0.0
        %1411 = vmatpush1.msra.mxu0 0.0
        %1412 = vmatprep.mubr.f32.mxu0 0.0
        %1413 = vmatmul.mubr.f32.gmra.mrb[0].mxu0 %v1346
        %v1414 = vpop.f32.mrb[0].mxu0
        %v1415 = vadd.f32 0.0, %v1414
        %v1416 = vpop.f32.mrb[0].mxu0
        %1417 = vdwg.mxu0
        %v1418 = vcombine.low %v1196, %v1342
        %v1419 = vcombine.high %v1196, %v1342
        %v1421 = vunpack.c.l.s4 1983009808
        %v1422 = vunpack.c.0.s8 %v1421
        %v1423 = vlaneseq
        %v1424 = vshrl.u32 %v1423, 7
        %v1425 = vsub.s32 %v1422, %v1424
        %v1426 = vrot.slane %v1418, %v1425
        %v1428 = vunpack.c.l.s4 1983009808
        %v1429 = vunpack.c.0.s8 %v1428
        %v1430 = vlaneseq
        %v1431 = vshrl.u32 %v1430, 7
        %v1432 = vsub.s32 %v1429, %v1431
        %v1433 = vrot.slane %v1419, %v1432
        %v1434 = vcombine.low %v1269, %v1415
        %v1435 = vcombine.high %v1269, %v1415
        %v1437 = vunpack.c.l.s4 1983009808
        %v1438 = vunpack.c.0.s8 %v1437
        %v1439 = vlaneseq
        %v1440 = vshrl.u32 %v1439, 7
        %v1441 = vsub.s32 %v1438, %v1440
        %v1442 = vrot.slane %v1434, %v1441
        %v1444 = vunpack.c.l.s4 1983009808
        %v1445 = vunpack.c.0.s8 %v1444
        %v1446 = vlaneseq
        %v1447 = vshrl.u32 %v1446, 7
        %v1448 = vsub.s32 %v1445, %v1447
        %v1449 = vrot.slane %v1435, %v1448
        %v1450 = vcombine.low %v1426, %v1442
        %v1451 = vcombine.high %v1426, %v1442
        %v1453 = vunpack.c.l.s4 1934713408
        %v1454 = vunpack.c.0.s8 %v1453
        %v1455 = vlaneseq
        %v1456 = vshrl.u32 %v1455, 7
        %v1457 = vsub.s32 %v1454, %v1456
        %v1458 = vrot.slane %v1450, %v1457
        %v1460 = vunpack.c.l.s4 1934713408
        %v1461 = vunpack.c.0.s8 %v1460
        %v1462 = vlaneseq
        %v1463 = vshrl.u32 %v1462, 7
        %v1464 = vsub.s32 %v1461, %v1463
        %v1465 = vrot.slane %v1451, %v1464
        %v1466 = vcombine.low %v1433, %v1449
        %v1467 = vcombine.high %v1433, %v1449
        %v1469 = vunpack.c.l.s4 1934713408
        %v1470 = vunpack.c.0.s8 %v1469
        %v1471 = vlaneseq
        %v1472 = vshrl.u32 %v1471, 7
        %v1473 = vsub.s32 %v1470, %v1472
        %v1474 = vrot.slane %v1466, %v1473
        %v1476 = vunpack.c.l.s4 1934713408
        %v1477 = vunpack.c.0.s8 %v1476
        %v1478 = vlaneseq
        %v1479 = vshrl.u32 %v1478, 7
        %v1480 = vsub.s32 %v1477, %v1479
        %v1481 = vrot.slane %v1467, %v1480
        %v1482 = vcombine.high %v1458, 0.0
        %v1483 = vcombine.high %v1465, 0.0
        %v1484 = vcombine.high %v1474, 0.0
        %v1485 = vcombine.high %v1481, 0.0
        %v1486 = vcombine.low %v1458, %v1465
        %v1488 = vunpack.c.l.s4 1983009808
        %v1489 = vunpack.c.0.s8 %v1488
        %v1490 = vlaneseq
        %v1491 = vshrl.u32 %v1490, 7
        %v1492 = vsub.s32 %v1489, %v1491
        %v1493 = vrot.slane %v1486, %v1492
        %v1494 = vcombine.low %v1482, %v1483
        %v1496 = vunpack.c.l.s4 1983009808
        %v1497 = vunpack.c.0.s8 %v1496
        %v1498 = vlaneseq
        %v1499 = vshrl.u32 %v1498, 7
        %v1500 = vsub.s32 %v1497, %v1499
        %v1501 = vrot.slane %v1494, %v1500
        %v1502 = vcombine.low %v1474, %v1481
        %v1504 = vunpack.c.l.s4 1983009808
        %v1505 = vunpack.c.0.s8 %v1504
        %v1506 = vlaneseq
        %v1507 = vshrl.u32 %v1506, 7
        %v1508 = vsub.s32 %v1505, %v1507
        %v1509 = vrot.slane %v1502, %v1508
        %v1510 = vcombine.low %v1484, %v1485
        %v1512 = vunpack.c.l.s4 1983009808
        %v1513 = vunpack.c.0.s8 %v1512
        %v1514 = vlaneseq
        %v1515 = vshrl.u32 %v1514, 7
        %v1516 = vsub.s32 %v1513, %v1515
        %v1517 = vrot.slane %v1510, %v1516
        %v1518 = vcombine.low %v1493, %v1501
        %v1519 = vcombine.high %v1493, %v1501
        %v1521 = vunpack.c.l.s4 1934713408
        %v1522 = vunpack.c.0.s8 %v1521
        %v1523 = vlaneseq
        %v1524 = vshrl.u32 %v1523, 7
        %v1525 = vsub.s32 %v1522, %v1524
        %v1526 = vrot.slane %v1518, %v1525
        %v1528 = vunpack.c.l.s4 1934713408
        %v1529 = vunpack.c.0.s8 %v1528
        %v1530 = vlaneseq
        %v1531 = vshrl.u32 %v1530, 7
        %v1532 = vsub.s32 %v1529, %v1531
        %v1533 = vrot.slane %v1519, %v1532
        %v1534 = vcombine.low %v1509, %v1517
        %v1535 = vcombine.high %v1509, %v1517
        %v1537 = vunpack.c.l.s4 1934713408
        %v1538 = vunpack.c.0.s8 %v1537
        %v1539 = vlaneseq
        %v1540 = vshrl.u32 %v1539, 7
        %v1541 = vsub.s32 %v1538, %v1540
        %v1542 = vrot.slane %v1534, %v1541
        %v1544 = vunpack.c.l.s4 1934713408
        %v1545 = vunpack.c.0.s8 %v1544
        %v1546 = vlaneseq
        %v1547 = vshrl.u32 %v1546, 7
        %v1548 = vsub.s32 %v1545, %v1547
        %v1549 = vrot.slane %v1535, %v1548
        %v1550 = vcombine.low %v1526, %v1542
        %v1551 = vcombine.high %v1526, %v1542
        %v1552 = vcombine.low %v1533, %v1549
        %v1553 = vcombine.high %v1533, %v1549
        %1555 = vrot.lane.b32.xlu0 %v1551, 8
        %v1556 = vpop.permute.xlu0 %1555
        %1559 = vrot.lane.b32.xlu0 %v1552, 16
        %v1560 = vpop.permute.xlu0 %1559
        %1563 = vrot.lane.b32.xlu0 %v1553, 24
        %v1564 = vpop.permute.xlu0 %1563
        %v1566 = vsel %vm777, %v1550, %v1556
        %vm1567 = vcmask 130048
        %v1568 = vsel %vm1567, %v1566, %v1560
        %vm1569 = vcmask 195584
        %v1570 = vsel %vm1569, %v1568, %v1564
        %1571 = vst.msk [vmem:[%s238] sm:$0xff] %vm254, %v1570
        %s1572 = sand.u32 %s124, 1
        %s1573 = scalar_lea.sflag [#allocation4], %s1572
        %s1574 = sand.u32 %s124, 1
        %s1575 = smul.addr %s1574, 8
        %s1576 = scalar_lea.vmem [#allocation7], %s1575
        // Predicated region
        $region45: #{tpu_custom_call.1} parent=35 // pred_check
          %p1577 = pneg %p134
        $region46: #{tpu_custom_call.1} parent=35 // pred_check_branch
          %1579 = sbr.rel (%p1577) target = $region48
        $region47: #{tpu_custom_call.1} parent=35 // pred_region
          %s1581 = ssub.s32 128, 128
          %1582 = vsyncadd %s1573, %s1581
          %s1583 = smul.addr %s22, 128
          %s1584 = scalar_lea.hbm %s4, %s1583
          %s1586 = sshll.u32 %s1576, 4
          %s1587 = int_to_ptr.vmem [resolvable:$true] %s1586
          %1589 = dma.vmem_to_hbm [thread:$0]  %s1587, 128, %s1584, %s1573
        $region48: #{tpu_custom_call.1} parent=35 // pred_fallthru
          _
      $region36: #{tpu_custom_call.1} parent=5 // pred_fallthru
        _
      %p1590 = scmp.le.s32.totalorder 2, %s17
      // Predicated region
      $region49: #{tpu_custom_call.1} parent=5 // pred_check
        %p1591 = pneg %p1590
      $region50: #{tpu_custom_call.1} parent=5 // pred_check_branch
        %1593 = sbr.rel (%p1591) target = $region52
      $region51: #{tpu_custom_call.1} parent=5 // pred_region
        %s1594 = ssub.s32 %s17, 2
        // Predicated region
        $region53: #{tpu_custom_call.1} parent=51 // pred_check
          %p1595 = pneg %p140
        $region54: #{tpu_custom_call.1} parent=51 // pred_check_branch
          %1597 = sbr.rel (%p1595) target = $region56
        $region55: #{tpu_custom_call.1} parent=51 // pred_region
          %s1598 = sand.u32 %s125, 1
          %s1599 = scalar_lea.sflag [#allocation4], %s1598
          %s1600 = sand.u32 %s125, 1
          %s1601 = smul.addr %s1600, 8
          %s1602 = scalar_lea.vmem [#allocation7], %s1601
          %1603 = dma.done %s1599, 128
        $region56: #{tpu_custom_call.1} parent=51 // pred_fallthru
          _
      $region52: #{tpu_custom_call.1} parent=5 // pred_fallthru
        _
    $region6: #{tpu_custom_call.1} parent=1 // loop_footer
      %s21 = sadd.s32 1, %s17
    $region7: #{tpu_custom_call.1} parent=1 // loop_footer_branch
      %16 = sbr.rel target = $region3
    $region8: #{tpu_custom_call.1} parent=1 // loop_exit
      _
    %1604 = vsyncpa [#allocation3], 1
    %s1605 = scalar_lea.sflag [#allocation3], 1
    %1606 = vsyncpa %s1605, 1
    %1607 = vsyncpa [#allocation6], 1
    %1608 = vsyncpa [#allocation4], 1
    %s1609 = scalar_lea.sflag [#allocation4], 1
    %1610 = vsyncpa %s1609, 1

</llo_original>
